<compile_context>
chip_gen: v7x
topology: tpu7x:2x2x1
jax: 0.10.0
libtpu: 0.0.40
codegen_flags: <defaults>
</compile_context>

<pallas_src>
import math

import jax
import jax.numpy as jnp
from jax.experimental import pallas as pl
from jax.experimental.pallas import tpu as pltpu

EPS = 1e-5

# Flipped to False (wrapper-side width repeat) if this Mosaic build rejects the
# in-kernel minor-dim interleave.  Correctness is identical either way.
_WIDTH_REPEAT_IN_KERNEL = True


def _vmem_capacity_bytes():
    """Physical VMEM of the local chip (v5e/v6e: 128 MiB, v7x: 64 MiB)."""
    try:
        info = pltpu.get_tpu_info()
        cap = getattr(info, "vmem_capacity_bytes", None)
        if cap:
            return int(cap)
    except Exception:
        pass
    try:
        kind = jax.devices()[0].device_kind.lower()
    except Exception:
        kind = ""
    if any(tag in kind for tag in ("v7", "7x", "tpu7")):
        return 64 << 20
    return 128 << 20


def _pick_channel_block(c1, c2, n, per_channel_bytes, budget_bytes,
                        max_cb=8, min_steps=8):
    """Channel-block size: largest common divisor of (c1, c2) that fits the
    per-step VMEM budget, preferring enough grid steps for 2-TC sharding (v7x).
    max_cb also bounds the static per-block unroll (vreg live ranges)."""
    g = math.gcd(c1, c2)
    fitting = [d for d in range(1, min(g, max_cb) + 1)
               if g % d == 0 and d * per_channel_bytes <= budget_bytes] or [1]
    for d in sorted(fitting, reverse=True):
        if n * (c1 // d + c2 // d) >= min_steps:
            return d
    # Tiny problem: smallest fitting block maximizes step count / balance.
    return min(fitting)


def _make_join_kernel(C1, C2, CB, nb1, H, W, width_repeat_in_kernel):
    w1 = W if width_repeat_in_kernel else 2 * W
    inv_n1 = 1.0 / float(H * w1)          # branch-1 stats on the (H, w1) tile
    inv_n2 = 1.0 / float(H * 4 * W)       # branch-2 stats over (2H, 2W)
    lane_aligned_half = (2 * W) % 128 == 0

    def _instance_norm(x, gamma, beta, inv_n):
        # Two-pass InstanceNorm2d: mean first, then centered sum of squares
        # (numerically safer than E[x^2]-E[x]^2), biased variance, eps inside
        # rsqrt (EUP), affine from SMEM scalars.
        xf = x.astype(jnp.float32)
        s = jnp.sum(jnp.sum(xf, axis=-1, keepdims=True), axis=-2, keepdims=True)
        mean = s * inv_n                                   # (1, 1)
        d = xf - mean
        v = jnp.sum(jnp.sum(d * d, axis=-1, keepdims=True), axis=-2, keepdims=True)
        scale = jax.lax.rsqrt(v * inv_n + EPS) * gamma     # (1, 1)
        return d * scale + beta

    def kernel(scale_ref, shift_ref, x1_ref, x2_ref, out_ref):
        cb = pl.program_id(1)

        @pl.when(cb < nb1)                 # upsampled branch (branch 1)
        def _():
            # Static unroll over the CB channels of this block; CB is capped by
            # the VMEM budget / max_cb so unrolled live ranges stay bounded.
            for j in range(CB):
                ch = cb * CB + j
                y = _instance_norm(x1_ref[0, j], scale_ref[ch], shift_ref[ch], inv_n1)
                if width_repeat_in_kernel:
                    # Nearest 2x width upsample fused at store time (no HBM
                    # intermediate); mean/var are invariant under replication.
                    y = jnp.repeat(y, 2, axis=-1)          # (H, 2W)
                yr = y.astype(out_ref.dtype)               # single cast
                # Height replication: output flat row h is [row_h | row_h].
                if lane_aligned_half:
                    # Two contiguous, unmasked slice stores -- no double-wide
                    # concat value held in vregs.
                    out_ref[0, j, :, : 2 * W] = yr
                    out_ref[0, j, :, 2 * W:] = yr
                else:
                    # Small maps: one wider (masked) store.
                    out_ref[0, j] = jnp.concatenate([yr, yr], axis=-1)

        @pl.when(cb >= nb1)                # pass-through branch (branch 2)
        def _():
            for j in range(CB):
                ch = C1 + (cb - nb1) * CB + j
                y = _instance_norm(x2_ref[0, j], scale_ref[ch], shift_ref[ch], inv_n2)
                out_ref[0, j] = y.astype(out_ref.dtype)

    return kernel


def _join_forward(in1, in2, scale, shift, *, width_repeat_in_kernel):
    N, C1, H, W = in1.shape
    _, C2, _, _ = in2.shape
    C_out = C1 + C2
    out_dtype = in1.dtype
    itemsize = jnp.dtype(out_dtype).itemsize

    if width_repeat_in_kernel:
        x1 = in1                                # (N, C1, H, W) -- no HBM intermediate
        w1 = W
    else:
        # Fallback only: materialize the width half of the upsample in the wrapper.
        x1 = jnp.repeat(in1, 2, axis=3)         # (N, C1, H, 2W)
        w1 = 2 * W
    # Lane-dense flat view of in2 / output: (2H, 2W) -> (H, 4W), free row-major.
    x2 = jnp.reshape(in2, (N, C2, H, 4 * W))

    # ---- generation-aware block sizing ------------------------------------
    vmem_cap = _vmem_capacity_bytes()
    vmem_limit = min(vmem_cap * 3 // 4, 96 << 20)      # 96 MiB v5e/v6e, 48 MiB v7x
    budget = min(32 << 20, vmem_cap // 2 - (8 << 20))  # resident per-step budget
    # Resident bytes per channel per grid step, including the x2 double
    # buffering Pallas allocates for every auto-pipelined BlockSpec (both
    # inputs stay resident even on the inactive branch -- clamped index maps),
    # plus a conservative allowance for f32 compute temporaries.
    per_channel = 2 * (w1 + 4 * W + 4 * W) * H * itemsize + 16 * H * W
    CB = _pick_channel_block(C1, C2, N, per_channel, budget)
    nb1, nb2 = C1 // CB, C2 // CB

    kernel = _make_join_kernel(C1, C2, CB, nb1, H, W, width_repeat_in_kernel)

    grid_spec = pltpu.PrefetchScalarGridSpec(
        num_scalar_prefetch=2,
        grid=(N, nb1 + nb2),
        in_specs=[
            # Branch-1 input: index clamped during branch-2 steps so the block
            # index repeats and no extra HBM fetch is issued (block just stays
            # resident in its double buffer).
            pl.BlockSpec((1, CB, H, w1),
                         lambda n, c, s, t: (n, jnp.minimum(c, nb1 - 1), 0, 0)),
            # Branch-2 input: clamped to block 0 during branch-1 steps.
            pl.BlockSpec((1, CB, H, 4 * W),
                         lambda n, c, s, t: (n, jnp.maximum(c - nb1, 0), 0, 0)),
        ],
        out_specs=pl.BlockSpec((1, CB, H, 4 * W),
                               lambda n, c, s, t: (n, c, 0, 0)),
    )

    out_flat = pl.pallas_call(
        kernel,
        out_shape=jax.ShapeDtypeStruct((N, C_out, H, 4 * W), out_dtype),
        grid_spec=grid_spec,
        compiler_params=pltpu.CompilerParams(
            dimension_semantics=("parallel", "parallel"),
            vmem_limit_bytes=int(vmem_limit),
        ),
    )(scale, shift, x1, x2)

    # Free row-major reshape back to NCHW (2H, 2W).
    return jnp.reshape(out_flat, (N, C_out, 2 * H, 2 * W))


def join_forward(in1, in2, gamma1, beta1, gamma2, beta2):
    """in1: (N, C1, H, W), in2: (N, C2, 2H, 2W) -> (N, C1+C2, 2H, 2W)."""
    global _WIDTH_REPEAT_IN_KERNEL
    N, C1, H, W = in1.shape
    N2, C2, H2, W2 = in2.shape
    assert N2 == N and H2 == 2 * H and W2 == 2 * W
    assert in1.dtype == in2.dtype

    # Affine params for both branches, concatenated; scalar-prefetched to SMEM.
    scale = jnp.concatenate([jnp.ravel(gamma1), jnp.ravel(gamma2)]).astype(jnp.float32)
    shift = jnp.concatenate([jnp.ravel(beta1), jnp.ravel(beta2)]).astype(jnp.float32)

    try:
        return _join_forward(in1, in2, scale, shift,
                             width_repeat_in_kernel=_WIDTH_REPEAT_IN_KERNEL)
    except Exception:
        if not _WIDTH_REPEAT_IN_KERNEL:
            raise
        # Defensive: if this toolchain rejects the in-kernel lane interleave,
        # fall back to the wrapper-side width repeat rather than failing.
        _WIDTH_REPEAT_IN_KERNEL = False
        return _join_forward(in1, in2, scale, shift, width_repeat_in_kernel=False)


def join_reference(in1, in2, gamma1, beta1, gamma2, beta2):
    """Pure-JAX reference mirroring the PyTorch forward."""
    def inorm(x, g, b):
        mean = jnp.mean(x, axis=(2, 3), keepdims=True)
        var = jnp.mean((x - mean) ** 2, axis=(2, 3), keepdims=True)
        y = (x - mean) / jnp.sqrt(var + EPS)
        return y * g.reshape(1, -1, 1, 1) + b.reshape(1, -1, 1, 1)

    in1_up = jnp.repeat(jnp.repeat(in1, 2, axis=2), 2, axis=3)
    return jnp.concatenate(
        [inorm(in1_up, gamma1, beta1), inorm(in2, gamma2, beta2)], axis=1)


if __name__ == "__main__":
    key = jax.random.PRNGKey(0)
    k1, k2, k3, k4, k5, k6 = jax.random.split(key, 6)

    N, C1, C2, H, W = 2, 4, 4, 16, 16
    in1 = jax.random.normal(k1, (N, C1, H, W), dtype=jnp.float32)
    in2 = jax.random.normal(k2, (N, C2, 2 * H, 2 * W), dtype=jnp.float32)

    # PyTorch default affine params are ones/zeros; perturb so affine path is used.
    gamma1 = 1.0 + 0.1 * jax.random.normal(k3, (C1,), dtype=jnp.float32)
    beta1 = 0.1 * jax.random.normal(k4, (C1,), dtype=jnp.float32)
    gamma2 = 1.0 + 0.1 * jax.random.normal(k5, (C2,), dtype=jnp.float32)
    beta2 = 0.1 * jax.random.normal(k6, (C2,), dtype=jnp.float32)

    # f32 I/O check against the pure-JAX reference.
    out = jax.block_until_ready(join_forward(in1, in2, gamma1, beta1, gamma2, beta2))
    ref = join_reference(in1, in2, gamma1, beta1, gamma2, beta2)
    assert out.shape == (N, C1 + C2, 2 * H, 2 * W), out.shape
    assert jnp.allclose(out, ref, atol=1e-4, rtol=1e-4), "f32 mismatch vs reference"

    # bf16 I/O path (halves HBM bytes; stats still accumulated in f32 in-kernel).
    in1_bf = in1.astype(jnp.bfloat16)
    in2_bf = in2.astype(jnp.bfloat16)
    out_bf = jax.block_until_ready(
        join_forward(in1_bf, in2_bf, gamma1, beta1, gamma2, beta2))
    ref_bf = join_reference(in1_bf.astype(jnp.float32), in2_bf.astype(jnp.float32),
                            gamma1, beta1, gamma2, beta2)
    assert out_bf.dtype == jnp.bfloat16
    assert jnp.allclose(out_bf.astype(jnp.float32), ref_bf, atol=1e-1, rtol=1e-1), \
        "bf16 mismatch vs reference"

    print("KERNEL_OK")
</pallas_src>

<mosaic_0001>
module attributes {stable_mosaic.version = 11 : i64} {
  func.func @kernel(%arg0: i32, %arg1: i32, %arg2: memref<8xf32, #tpu.memory_space<smem>>, %arg3: memref<8xf32, #tpu.memory_space<smem>>, %arg4: memref<1x2x16x16xf32, #tpu.memory_space<vmem>>, %arg5: memref<1x2x16x64xf32, #tpu.memory_space<vmem>>, %arg6: memref<1x2x16x64xf32, #tpu.memory_space<vmem>>) attributes {dimension_semantics = [#tpu.dimension_semantics<parallel>, #tpu.dimension_semantics<parallel>], iteration_bounds = array<i64: 2, 4>, scalar_prefetch = 2 : i64, scratch_operands = 0 : i64, tpu.core_type = #tpu.core_type<tc>, window_params = [{transform_indices = @transform_0, window_bounds = array<i64: 1, 2, 16, 16>}, {transform_indices = @transform_1, window_bounds = array<i64: 1, 2, 16, 64>}, {transform_indices = @transform_2, window_bounds = array<i64: 1, 2, 16, 64>}]} {
    %c2_i32 = arith.constant 2 : i32
    %0 = arith.cmpi slt, %arg1, %c2_i32 : i32
    %1 = arith.extui %0 : i1 to i32
    %c0_i32 = arith.constant 0 : i32
    %2 = arith.cmpi ne, %1, %c0_i32 : i32
    scf.if %2 {
      %c2_i32_2 = arith.constant 2 : i32
      %6 = arith.muli %arg1, %c2_i32_2 : i32
      %c0_i32_3 = arith.constant 0 : i32
      %7 = arith.addi %6, %c0_i32_3 : i32
      %c0 = arith.constant 0 : index
      %c0_4 = arith.constant 0 : index
      %c0_5 = arith.constant 0 : index
      %c0_6 = arith.constant 0 : index
      %8 = vector.load %arg4[%c0, %c0_4, %c0_5, %c0_6] : memref<1x2x16x16xf32, #tpu.memory_space<vmem>>, vector<1x1x16x16xf32>
      %9 = vector.shape_cast %8 : vector<1x1x16x16xf32> to vector<16x16xf32>
      %10 = arith.index_cast %7 : i32 to index
      %11 = memref.load %arg2[%10] : memref<8xf32, #tpu.memory_space<smem>>
      %12 = arith.index_cast %7 : i32 to index
      %13 = memref.load %arg3[%12] : memref<8xf32, #tpu.memory_space<smem>>
      %cst = arith.constant dense<0.000000e+00> : vector<16xf32>
      %14 = vector.multi_reduction <add>, %9, %cst [1] : vector<16x16xf32> to vector<16xf32>
      %15 = vector.shape_cast %14 : vector<16xf32> to vector<16x1xf32>
      %cst_7 = arith.constant dense<0.000000e+00> : vector<1xf32>
      %16 = vector.multi_reduction <add>, %15, %cst_7 [0] : vector<16x1xf32> to vector<1xf32>
      %17 = vector.shape_cast %16 : vector<1xf32> to vector<1x1xf32>
      %cst_8 = arith.constant 3.906250e-03 : f32
      %18 = vector.broadcast %cst_8 : f32 to vector<1x1xf32>
      %19 = arith.mulf %17, %18 : vector<1x1xf32>
      %20 = vector.broadcast %19 : vector<1x1xf32> to vector<16x16xf32>
      %21 = arith.subf %9, %20 : vector<16x16xf32>
      %22 = arith.mulf %21, %21 : vector<16x16xf32>
      %cst_9 = arith.constant dense<0.000000e+00> : vector<16xf32>
      %23 = vector.multi_reduction <add>, %22, %cst_9 [1] : vector<16x16xf32> to vector<16xf32>
      %24 = vector.shape_cast %23 : vector<16xf32> to vector<16x1xf32>
      %cst_10 = arith.constant dense<0.000000e+00> : vector<1xf32>
      %25 = vector.multi_reduction <add>, %24, %cst_10 [0] : vector<16x1xf32> to vector<1xf32>
      %26 = vector.shape_cast %25 : vector<1xf32> to vector<1x1xf32>
      %cst_11 = arith.constant 3.906250e-03 : f32
      %27 = vector.broadcast %cst_11 : f32 to vector<1x1xf32>
      %28 = arith.mulf %26, %27 : vector<1x1xf32>
      %cst_12 = arith.constant 9.99999974E-6 : f32
      %29 = vector.broadcast %cst_12 : f32 to vector<1x1xf32>
      %30 = arith.addf %28, %29 : vector<1x1xf32>
      %31 = math.rsqrt %30 : vector<1x1xf32>
      %32 = vector.broadcast %11 : f32 to vector<1x1xf32>
      %33 = arith.mulf %31, %32 : vector<1x1xf32>
      %34 = vector.broadcast %33 : vector<1x1xf32> to vector<16x16xf32>
      %35 = arith.mulf %21, %34 : vector<16x16xf32>
      %36 = vector.broadcast %13 : f32 to vector<16x16xf32>
      %37 = arith.addf %35, %36 : vector<16x16xf32>
      %38 = vector.shape_cast %37 : vector<16x16xf32> to vector<16x16x1xf32>
      %39 = vector.broadcast %38 : vector<16x16x1xf32> to vector<16x16x2xf32>
      %40 = vector.shape_cast %39 : vector<16x16x2xf32> to vector<16x32xf32>
      %41 = tpu.concatenate %40, %40 in 1 : vector<16x32xf32>, vector<16x32xf32> -> vector<16x64xf32>
      %c0_13 = arith.constant 0 : index
      %c0_14 = arith.constant 0 : index
      %c0_15 = arith.constant 0 : index
      %c0_16 = arith.constant 0 : index
      %42 = vector.load %arg6[%c0_13, %c0_14, %c0_15, %c0_16] : memref<1x2x16x64xf32, #tpu.memory_space<vmem>>, vector<1x1x16x64xf32>
      %43 = vector.shape_cast %42 : vector<1x1x16x64xf32> to vector<16x64xf32>
      %44 = vector.shape_cast %41 : vector<16x64xf32> to vector<1x1x16x64xf32>
      tpu.vector_store %arg6[%c0_13, %c0_14, %c0_15, %c0_16], %44 {strides = array<i32>} : memref<1x2x16x64xf32, #tpu.memory_space<vmem>>, vector<1x1x16x64xf32>,
      %c2_i32_17 = arith.constant 2 : i32
      %45 = arith.muli %arg1, %c2_i32_17 : i32
      %c1_i32 = arith.constant 1 : i32
      %46 = arith.addi %45, %c1_i32 : i32
      %c0_18 = arith.constant 0 : index
      %c1 = arith.constant 1 : index
      %c0_19 = arith.constant 0 : index
      %c0_20 = arith.constant 0 : index
      %47 = vector.load %arg4[%c0_18, %c1, %c0_19, %c0_20] : memref<1x2x16x16xf32, #tpu.memory_space<vmem>>, vector<1x1x16x16xf32>
      %48 = vector.shape_cast %47 : vector<1x1x16x16xf32> to vector<16x16xf32>
      %49 = arith.index_cast %46 : i32 to index
      %50 = memref.load %arg2[%49] : memref<8xf32, #tpu.memory_space<smem>>
      %51 = arith.index_cast %46 : i32 to index
      %52 = memref.load %arg3[%51] : memref<8xf32, #tpu.memory_space<smem>>
      %cst_21 = arith.constant dense<0.000000e+00> : vector<16xf32>
      %53 = vector.multi_reduction <add>, %48, %cst_21 [1] : vector<16x16xf32> to vector<16xf32>
      %54 = vector.shape_cast %53 : vector<16xf32> to vector<16x1xf32>
      %cst_22 = arith.constant dense<0.000000e+00> : vector<1xf32>
      %55 = vector.multi_reduction <add>, %54, %cst_22 [0] : vector<16x1xf32> to vector<1xf32>
      %56 = vector.shape_cast %55 : vector<1xf32> to vector<1x1xf32>
      %cst_23 = arith.constant 3.906250e-03 : f32
      %57 = vector.broadcast %cst_23 : f32 to vector<1x1xf32>
      %58 = arith.mulf %56, %57 : vector<1x1xf32>
      %59 = vector.broadcast %58 : vector<1x1xf32> to vector<16x16xf32>
      %60 = arith.subf %48, %59 : vector<16x16xf32>
      %61 = arith.mulf %60, %60 : vector<16x16xf32>
      %cst_24 = arith.constant dense<0.000000e+00> : vector<16xf32>
      %62 = vector.multi_reduction <add>, %61, %cst_24 [1] : vector<16x16xf32> to vector<16xf32>
      %63 = vector.shape_cast %62 : vector<16xf32> to vector<16x1xf32>
      %cst_25 = arith.constant dense<0.000000e+00> : vector<1xf32>
      %64 = vector.multi_reduction <add>, %63, %cst_25 [0] : vector<16x1xf32> to vector<1xf32>
      %65 = vector.shape_cast %64 : vector<1xf32> to vector<1x1xf32>
      %cst_26 = arith.constant 3.906250e-03 : f32
      %66 = vector.broadcast %cst_26 : f32 to vector<1x1xf32>
      %67 = arith.mulf %65, %66 : vector<1x1xf32>
      %cst_27 = arith.constant 9.99999974E-6 : f32
      %68 = vector.broadcast %cst_27 : f32 to vector<1x1xf32>
      %69 = arith.addf %67, %68 : vector<1x1xf32>
      %70 = math.rsqrt %69 : vector<1x1xf32>
      %71 = vector.broadcast %50 : f32 to vector<1x1xf32>
      %72 = arith.mulf %70, %71 : vector<1x1xf32>
      %73 = vector.broadcast %72 : vector<1x1xf32> to vector<16x16xf32>
      %74 = arith.mulf %60, %73 : vector<16x16xf32>
      %75 = vector.broadcast %52 : f32 to vector<16x16xf32>
      %76 = arith.addf %74, %75 : vector<16x16xf32>
      %77 = vector.shape_cast %76 : vector<16x16xf32> to vector<16x16x1xf32>
      %78 = vector.broadcast %77 : vector<16x16x1xf32> to vector<16x16x2xf32>
      %79 = vector.shape_cast %78 : vector<16x16x2xf32> to vector<16x32xf32>
      %80 = tpu.concatenate %79, %79 in 1 : vector<16x32xf32>, vector<16x32xf32> -> vector<16x64xf32>
      %c0_28 = arith.constant 0 : index
      %c1_29 = arith.constant 1 : index
      %c0_30 = arith.constant 0 : index
      %c0_31 = arith.constant 0 : index
      %81 = vector.load %arg6[%c0_28, %c1_29, %c0_30, %c0_31] : memref<1x2x16x64xf32, #tpu.memory_space<vmem>>, vector<1x1x16x64xf32>
      %82 = vector.shape_cast %81 : vector<1x1x16x64xf32> to vector<16x64xf32>
      %83 = vector.shape_cast %80 : vector<16x64xf32> to vector<1x1x16x64xf32>
      tpu.vector_store %arg6[%c0_28, %c1_29, %c0_30, %c0_31], %83 {strides = array<i32>} : memref<1x2x16x64xf32, #tpu.memory_space<vmem>>, vector<1x1x16x64xf32>,
    } else {
    }
    %c2_i32_0 = arith.constant 2 : i32
    %3 = arith.cmpi sge, %arg1, %c2_i32_0 : i32
    %4 = arith.extui %3 : i1 to i32
    %c0_i32_1 = arith.constant 0 : i32
    %5 = arith.cmpi ne, %4, %c0_i32_1 : i32
    scf.if %5 {
      %c2_i32_2 = arith.constant 2 : i32
      %6 = arith.subi %arg1, %c2_i32_2 : i32
      %c2_i32_3 = arith.constant 2 : i32
      %7 = arith.muli %6, %c2_i32_3 : i32
      %c4_i32 = arith.constant 4 : i32
      %8 = arith.addi %c4_i32, %7 : i32
      %c0_i32_4 = arith.constant 0 : i32
      %9 = arith.addi %8, %c0_i32_4 : i32
      %c0 = arith.constant 0 : index
      %c0_5 = arith.constant 0 : index
      %c0_6 = arith.constant 0 : index
      %c0_7 = arith.constant 0 : index
      %10 = vector.load %arg5[%c0, %c0_5, %c0_6, %c0_7] : memref<1x2x16x64xf32, #tpu.memory_space<vmem>>, vector<1x1x16x64xf32>
      %11 = vector.shape_cast %10 : vector<1x1x16x64xf32> to vector<16x64xf32>
      %12 = arith.index_cast %9 : i32 to index
      %13 = memref.load %arg2[%12] : memref<8xf32, #tpu.memory_space<smem>>
      %14 = arith.index_cast %9 : i32 to index
      %15 = memref.load %arg3[%14] : memref<8xf32, #tpu.memory_space<smem>>
      %cst = arith.constant dense<0.000000e+00> : vector<16xf32>
      %16 = vector.multi_reduction <add>, %11, %cst [1] : vector<16x64xf32> to vector<16xf32>
      %17 = vector.shape_cast %16 : vector<16xf32> to vector<16x1xf32>
      %cst_8 = arith.constant dense<0.000000e+00> : vector<1xf32>
      %18 = vector.multi_reduction <add>, %17, %cst_8 [0] : vector<16x1xf32> to vector<1xf32>
      %19 = vector.shape_cast %18 : vector<1xf32> to vector<1x1xf32>
      %cst_9 = arith.constant 9.765625E-4 : f32
      %20 = vector.broadcast %cst_9 : f32 to vector<1x1xf32>
      %21 = arith.mulf %19, %20 : vector<1x1xf32>
      %22 = vector.broadcast %21 : vector<1x1xf32> to vector<16x64xf32>
      %23 = arith.subf %11, %22 : vector<16x64xf32>
      %24 = arith.mulf %23, %23 : vector<16x64xf32>
      %cst_10 = arith.constant dense<0.000000e+00> : vector<16xf32>
      %25 = vector.multi_reduction <add>, %24, %cst_10 [1] : vector<16x64xf32> to vector<16xf32>
      %26 = vector.shape_cast %25 : vector<16xf32> to vector<16x1xf32>
      %cst_11 = arith.constant dense<0.000000e+00> : vector<1xf32>
      %27 = vector.multi_reduction <add>, %26, %cst_11 [0] : vector<16x1xf32> to vector<1xf32>
      %28 = vector.shape_cast %27 : vector<1xf32> to vector<1x1xf32>
      %cst_12 = arith.constant 9.765625E-4 : f32
      %29 = vector.broadcast %cst_12 : f32 to vector<1x1xf32>
      %30 = arith.mulf %28, %29 : vector<1x1xf32>
      %cst_13 = arith.constant 9.99999974E-6 : f32
      %31 = vector.broadcast %cst_13 : f32 to vector<1x1xf32>
      %32 = arith.addf %30, %31 : vector<1x1xf32>
      %33 = math.rsqrt %32 : vector<1x1xf32>
      %34 = vector.broadcast %13 : f32 to vector<1x1xf32>
      %35 = arith.mulf %33, %34 : vector<1x1xf32>
      %36 = vector.broadcast %35 : vector<1x1xf32> to vector<16x64xf32>
      %37 = arith.mulf %23, %36 : vector<16x64xf32>
      %38 = vector.broadcast %15 : f32 to vector<16x64xf32>
      %39 = arith.addf %37, %38 : vector<16x64xf32>
      %c0_14 = arith.constant 0 : index
      %c0_15 = arith.constant 0 : index
      %c0_16 = arith.constant 0 : index
      %c0_17 = arith.constant 0 : index
      %40 = vector.load %arg6[%c0_14, %c0_15, %c0_16, %c0_17] : memref<1x2x16x64xf32, #tpu.memory_space<vmem>>, vector<1x1x16x64xf32>
      %41 = vector.shape_cast %40 : vector<1x1x16x64xf32> to vector<16x64xf32>
      %42 = vector.shape_cast %39 : vector<16x64xf32> to vector<1x1x16x64xf32>
      tpu.vector_store %arg6[%c0_14, %c0_15, %c0_16, %c0_17], %42 {strides = array<i32>} : memref<1x2x16x64xf32, #tpu.memory_space<vmem>>, vector<1x1x16x64xf32>,
      %c2_i32_18 = arith.constant 2 : i32
      %43 = arith.subi %arg1, %c2_i32_18 : i32
      %c2_i32_19 = arith.constant 2 : i32
      %44 = arith.muli %43, %c2_i32_19 : i32
      %c4_i32_20 = arith.constant 4 : i32
      %45 = arith.addi %c4_i32_20, %44 : i32
      %c1_i32 = arith.constant 1 : i32
      %46 = arith.addi %45, %c1_i32 : i32
      %c0_21 = arith.constant 0 : index
      %c1 = arith.constant 1 : index
      %c0_22 = arith.constant 0 : index
      %c0_23 = arith.constant 0 : index
      %47 = vector.load %arg5[%c0_21, %c1, %c0_22, %c0_23] : memref<1x2x16x64xf32, #tpu.memory_space<vmem>>, vector<1x1x16x64xf32>
      %48 = vector.shape_cast %47 : vector<1x1x16x64xf32> to vector<16x64xf32>
      %49 = arith.index_cast %46 : i32 to index
      %50 = memref.load %arg2[%49] : memref<8xf32, #tpu.memory_space<smem>>
      %51 = arith.index_cast %46 : i32 to index
      %52 = memref.load %arg3[%51] : memref<8xf32, #tpu.memory_space<smem>>
      %cst_24 = arith.constant dense<0.000000e+00> : vector<16xf32>
      %53 = vector.multi_reduction <add>, %48, %cst_24 [1] : vector<16x64xf32> to vector<16xf32>
      %54 = vector.shape_cast %53 : vector<16xf32> to vector<16x1xf32>
      %cst_25 = arith.constant dense<0.000000e+00> : vector<1xf32>
      %55 = vector.multi_reduction <add>, %54, %cst_25 [0] : vector<16x1xf32> to vector<1xf32>
      %56 = vector.shape_cast %55 : vector<1xf32> to vector<1x1xf32>
      %cst_26 = arith.constant 9.765625E-4 : f32
      %57 = vector.broadcast %cst_26 : f32 to vector<1x1xf32>
      %58 = arith.mulf %56, %57 : vector<1x1xf32>
      %59 = vector.broadcast %58 : vector<1x1xf32> to vector<16x64xf32>
      %60 = arith.subf %48, %59 : vector<16x64xf32>
      %61 = arith.mulf %60, %60 : vector<16x64xf32>
      %cst_27 = arith.constant dense<0.000000e+00> : vector<16xf32>
      %62 = vector.multi_reduction <add>, %61, %cst_27 [1] : vector<16x64xf32> to vector<16xf32>
      %63 = vector.shape_cast %62 : vector<16xf32> to vector<16x1xf32>
      %cst_28 = arith.constant dense<0.000000e+00> : vector<1xf32>
      %64 = vector.multi_reduction <add>, %63, %cst_28 [0] : vector<16x1xf32> to vector<1xf32>
      %65 = vector.shape_cast %64 : vector<1xf32> to vector<1x1xf32>
      %cst_29 = arith.constant 9.765625E-4 : f32
      %66 = vector.broadcast %cst_29 : f32 to vector<1x1xf32>
      %67 = arith.mulf %65, %66 : vector<1x1xf32>
      %cst_30 = arith.constant 9.99999974E-6 : f32
      %68 = vector.broadcast %cst_30 : f32 to vector<1x1xf32>
      %69 = arith.addf %67, %68 : vector<1x1xf32>
      %70 = math.rsqrt %69 : vector<1x1xf32>
      %71 = vector.broadcast %50 : f32 to vector<1x1xf32>
      %72 = arith.mulf %70, %71 : vector<1x1xf32>
      %73 = vector.broadcast %72 : vector<1x1xf32> to vector<16x64xf32>
      %74 = arith.mulf %60, %73 : vector<16x64xf32>
      %75 = vector.broadcast %52 : f32 to vector<16x64xf32>
      %76 = arith.addf %74, %75 : vector<16x64xf32>
      %c0_31 = arith.constant 0 : index
      %c1_32 = arith.constant 1 : index
      %c0_33 = arith.constant 0 : index
      %c0_34 = arith.constant 0 : index
      %77 = vector.load %arg6[%c0_31, %c1_32, %c0_33, %c0_34] : memref<1x2x16x64xf32, #tpu.memory_space<vmem>>, vector<1x1x16x64xf32>
      %78 = vector.shape_cast %77 : vector<1x1x16x64xf32> to vector<16x64xf32>
      %79 = vector.shape_cast %76 : vector<16x64xf32> to vector<1x1x16x64xf32>
      tpu.vector_store %arg6[%c0_31, %c1_32, %c0_33, %c0_34], %79 {strides = array<i32>} : memref<1x2x16x64xf32, #tpu.memory_space<vmem>>, vector<1x1x16x64xf32>,
    } else {
    }
    return
  }
  func.func @transform_0(%arg0: i32, %arg1: i32, %arg2: memref<8xf32, #tpu.memory_space<smem>>, %arg3: memref<8xf32, #tpu.memory_space<smem>>) -> (i32, i32, i32, i32) {
    %c1_i32 = arith.constant 1 : i32
    %0 = arith.minsi %arg1, %c1_i32 : i32
    %c0_i32 = arith.constant 0 : i32
    %c0_i32_0 = arith.constant 0 : i32
    %c0_i32_1 = arith.constant 0 : i32
    return %arg0, %0, %c0_i32, %c0_i32_0 : i32, i32, i32, i32
  }
  func.func @transform_1(%arg0: i32, %arg1: i32, %arg2: memref<8xf32, #tpu.memory_space<smem>>, %arg3: memref<8xf32, #tpu.memory_space<smem>>) -> (i32, i32, i32, i32) {
    %c2_i32 = arith.constant 2 : i32
    %0 = arith.subi %arg1, %c2_i32 : i32
    %c0_i32 = arith.constant 0 : i32
    %1 = arith.maxsi %0, %c0_i32 : i32
    %c0_i32_0 = arith.constant 0 : i32
    %c0_i32_1 = arith.constant 0 : i32
    %c0_i32_2 = arith.constant 0 : i32
    return %arg0, %1, %c0_i32_0, %c0_i32_1 : i32, i32, i32, i32
  }
  func.func @transform_2(%arg0: i32, %arg1: i32, %arg2: memref<8xf32, #tpu.memory_space<smem>>, %arg3: memref<8xf32, #tpu.memory_space<smem>>) -> (i32, i32, i32, i32) {
    %c0_i32 = arith.constant 0 : i32
    %c0_i32_0 = arith.constant 0 : i32
    %c0_i32_1 = arith.constant 0 : i32
    return %arg0, %arg1, %c0_i32, %c0_i32_0 : i32, i32, i32, i32
  }
}

module attributes {stable_mosaic.version = 11 : i64} {
  func.func @kernel(%arg0: i32, %arg1: i32, %arg2: memref<8xf32, #tpu.memory_space<smem>>, %arg3: memref<8xf32, #tpu.memory_space<smem>>, %arg4: memref<1x2x16x32xf32, #tpu.memory_space<vmem>>, %arg5: memref<1x2x16x64xf32, #tpu.memory_space<vmem>>, %arg6: memref<1x2x16x64xf32, #tpu.memory_space<vmem>>) attributes {dimension_semantics = [#tpu.dimension_semantics<parallel>, #tpu.dimension_semantics<parallel>], iteration_bounds = array<i64: 2, 4>, scalar_prefetch = 2 : i64, scratch_operands = 0 : i64, tpu.core_type = #tpu.core_type<tc>, window_params = [{transform_indices = @transform_0, window_bounds = array<i64: 1, 2, 16, 32>}, {transform_indices = @transform_1, window_bounds = array<i64: 1, 2, 16, 64>}, {transform_indices = @transform_2, window_bounds = array<i64: 1, 2, 16, 64>}]} {
    %c2_i32 = arith.constant 2 : i32
    %0 = arith.cmpi slt, %arg1, %c2_i32 : i32
    %1 = arith.extui %0 : i1 to i32
    %c0_i32 = arith.constant 0 : i32
    %2 = arith.cmpi ne, %1, %c0_i32 : i32
    scf.if %2 {
      %c2_i32_2 = arith.constant 2 : i32
      %6 = arith.muli %arg1, %c2_i32_2 : i32
      %c0_i32_3 = arith.constant 0 : i32
      %7 = arith.addi %6, %c0_i32_3 : i32
      %c0 = arith.constant 0 : index
      %c0_4 = arith.constant 0 : index
      %c0_5 = arith.constant 0 : index
      %c0_6 = arith.constant 0 : index
      %8 = vector.load %arg4[%c0, %c0_4, %c0_5, %c0_6] : memref<1x2x16x32xf32, #tpu.memory_space<vmem>>, vector<1x1x16x32xf32>
      %9 = vector.shape_cast %8 : vector<1x1x16x32xf32> to vector<16x32xf32>
      %10 = arith.index_cast %7 : i32 to index
      %11 = memref.load %arg2[%10] : memref<8xf32, #tpu.memory_space<smem>>
      %12 = arith.index_cast %7 : i32 to index
      %13 = memref.load %arg3[%12] : memref<8xf32, #tpu.memory_space<smem>>
      %cst = arith.constant dense<0.000000e+00> : vector<16xf32>
      %14 = vector.multi_reduction <add>, %9, %cst [1] : vector<16x32xf32> to vector<16xf32>
      %15 = vector.shape_cast %14 : vector<16xf32> to vector<16x1xf32>
      %cst_7 = arith.constant dense<0.000000e+00> : vector<1xf32>
      %16 = vector.multi_reduction <add>, %15, %cst_7 [0] : vector<16x1xf32> to vector<1xf32>
      %17 = vector.shape_cast %16 : vector<1xf32> to vector<1x1xf32>
      %cst_8 = arith.constant 0.001953125 : f32
      %18 = vector.broadcast %cst_8 : f32 to vector<1x1xf32>
      %19 = arith.mulf %17, %18 : vector<1x1xf32>
      %20 = vector.broadcast %19 : vector<1x1xf32> to vector<16x32xf32>
      %21 = arith.subf %9, %20 : vector<16x32xf32>
      %22 = arith.mulf %21, %21 : vector<16x32xf32>
      %cst_9 = arith.constant dense<0.000000e+00> : vector<16xf32>
      %23 = vector.multi_reduction <add>, %22, %cst_9 [1] : vector<16x32xf32> to vector<16xf32>
      %24 = vector.shape_cast %23 : vector<16xf32> to vector<16x1xf32>
      %cst_10 = arith.constant dense<0.000000e+00> : vector<1xf32>
      %25 = vector.multi_reduction <add>, %24, %cst_10 [0] : vector<16x1xf32> to vector<1xf32>
      %26 = vector.shape_cast %25 : vector<1xf32> to vector<1x1xf32>
      %cst_11 = arith.constant 0.001953125 : f32
      %27 = vector.broadcast %cst_11 : f32 to vector<1x1xf32>
      %28 = arith.mulf %26, %27 : vector<1x1xf32>
      %cst_12 = arith.constant 9.99999974E-6 : f32
      %29 = vector.broadcast %cst_12 : f32 to vector<1x1xf32>
      %30 = arith.addf %28, %29 : vector<1x1xf32>
      %31 = math.rsqrt %30 : vector<1x1xf32>
      %32 = vector.broadcast %11 : f32 to vector<1x1xf32>
      %33 = arith.mulf %31, %32 : vector<1x1xf32>
      %34 = vector.broadcast %33 : vector<1x1xf32> to vector<16x32xf32>
      %35 = arith.mulf %21, %34 : vector<16x32xf32>
      %36 = vector.broadcast %13 : f32 to vector<16x32xf32>
      %37 = arith.addf %35, %36 : vector<16x32xf32>
      %38 = tpu.concatenate %37, %37 in 1 : vector<16x32xf32>, vector<16x32xf32> -> vector<16x64xf32>
      %c0_13 = arith.constant 0 : index
      %c0_14 = arith.constant 0 : index
      %c0_15 = arith.constant 0 : index
      %c0_16 = arith.constant 0 : index
      %39 = vector.load %arg6[%c0_13, %c0_14, %c0_15, %c0_16] : memref<1x2x16x64xf32, #tpu.memory_space<vmem>>, vector<1x1x16x64xf32>
      %40 = vector.shape_cast %39 : vector<1x1x16x64xf32> to vector<16x64xf32>
      %41 = vector.shape_cast %38 : vector<16x64xf32> to vector<1x1x16x64xf32>
      tpu.vector_store %arg6[%c0_13, %c0_14, %c0_15, %c0_16], %41 {strides = array<i32>} : memref<1x2x16x64xf32, #tpu.memory_space<vmem>>, vector<1x1x16x64xf32>,
      %c2_i32_17 = arith.constant 2 : i32
      %42 = arith.muli %arg1, %c2_i32_17 : i32
      %c1_i32 = arith.constant 1 : i32
      %43 = arith.addi %42, %c1_i32 : i32
      %c0_18 = arith.constant 0 : index
      %c1 = arith.constant 1 : index
      %c0_19 = arith.constant 0 : index
      %c0_20 = arith.constant 0 : index
      %44 = vector.load %arg4[%c0_18, %c1, %c0_19, %c0_20] : memref<1x2x16x32xf32, #tpu.memory_space<vmem>>, vector<1x1x16x32xf32>
      %45 = vector.shape_cast %44 : vector<1x1x16x32xf32> to vector<16x32xf32>
      %46 = arith.index_cast %43 : i32 to index
      %47 = memref.load %arg2[%46] : memref<8xf32, #tpu.memory_space<smem>>
      %48 = arith.index_cast %43 : i32 to index
      %49 = memref.load %arg3[%48] : memref<8xf32, #tpu.memory_space<smem>>
      %cst_21 = arith.constant dense<0.000000e+00> : vector<16xf32>
      %50 = vector.multi_reduction <add>, %45, %cst_21 [1] : vector<16x32xf32> to vector<16xf32>
      %51 = vector.shape_cast %50 : vector<16xf32> to vector<16x1xf32>
      %cst_22 = arith.constant dense<0.000000e+00> : vector<1xf32>
      %52 = vector.multi_reduction <add>, %51, %cst_22 [0] : vector<16x1xf32> to vector<1xf32>
      %53 = vector.shape_cast %52 : vector<1xf32> to vector<1x1xf32>
      %cst_23 = arith.constant 0.001953125 : f32
      %54 = vector.broadcast %cst_23 : f32 to vector<1x1xf32>
      %55 = arith.mulf %53, %54 : vector<1x1xf32>
      %56 = vector.broadcast %55 : vector<1x1xf32> to vector<16x32xf32>
      %57 = arith.subf %45, %56 : vector<16x32xf32>
      %58 = arith.mulf %57, %57 : vector<16x32xf32>
      %cst_24 = arith.constant dense<0.000000e+00> : vector<16xf32>
      %59 = vector.multi_reduction <add>, %58, %cst_24 [1] : vector<16x32xf32> to vector<16xf32>
      %60 = vector.shape_cast %59 : vector<16xf32> to vector<16x1xf32>
      %cst_25 = arith.constant dense<0.000000e+00> : vector<1xf32>
      %61 = vector.multi_reduction <add>, %60, %cst_25 [0] : vector<16x1xf32> to vector<1xf32>
      %62 = vector.shape_cast %61 : vector<1xf32> to vector<1x1xf32>
      %cst_26 = arith.constant 0.001953125 : f32
      %63 = vector.broadcast %cst_26 : f32 to vector<1x1xf32>
      %64 = arith.mulf %62, %63 : vector<1x1xf32>
      %cst_27 = arith.constant 9.99999974E-6 : f32
      %65 = vector.broadcast %cst_27 : f32 to vector<1x1xf32>
      %66 = arith.addf %64, %65 : vector<1x1xf32>
      %67 = math.rsqrt %66 : vector<1x1xf32>
      %68 = vector.broadcast %47 : f32 to vector<1x1xf32>
      %69 = arith.mulf %67, %68 : vector<1x1xf32>
      %70 = vector.broadcast %69 : vector<1x1xf32> to vector<16x32xf32>
      %71 = arith.mulf %57, %70 : vector<16x32xf32>
      %72 = vector.broadcast %49 : f32 to vector<16x32xf32>
      %73 = arith.addf %71, %72 : vector<16x32xf32>
      %74 = tpu.concatenate %73, %73 in 1 : vector<16x32xf32>, vector<16x32xf32> -> vector<16x64xf32>
      %c0_28 = arith.constant 0 : index
      %c1_29 = arith.constant 1 : index
      %c0_30 = arith.constant 0 : index
      %c0_31 = arith.constant 0 : index
      %75 = vector.load %arg6[%c0_28, %c1_29, %c0_30, %c0_31] : memref<1x2x16x64xf32, #tpu.memory_space<vmem>>, vector<1x1x16x64xf32>
      %76 = vector.shape_cast %75 : vector<1x1x16x64xf32> to vector<16x64xf32>
      %77 = vector.shape_cast %74 : vector<16x64xf32> to vector<1x1x16x64xf32>
      tpu.vector_store %arg6[%c0_28, %c1_29, %c0_30, %c0_31], %77 {strides = array<i32>} : memref<1x2x16x64xf32, #tpu.memory_space<vmem>>, vector<1x1x16x64xf32>,
    } else {
    }
    %c2_i32_0 = arith.constant 2 : i32
    %3 = arith.cmpi sge, %arg1, %c2_i32_0 : i32
    %4 = arith.extui %3 : i1 to i32
    %c0_i32_1 = arith.constant 0 : i32
    %5 = arith.cmpi ne, %4, %c0_i32_1 : i32
    scf.if %5 {
      %c2_i32_2 = arith.constant 2 : i32
      %6 = arith.subi %arg1, %c2_i32_2 : i32
      %c2_i32_3 = arith.constant 2 : i32
      %7 = arith.muli %6, %c2_i32_3 : i32
      %c4_i32 = arith.constant 4 : i32
      %8 = arith.addi %c4_i32, %7 : i32
      %c0_i32_4 = arith.constant 0 : i32
      %9 = arith.addi %8, %c0_i32_4 : i32
      %c0 = arith.constant 0 : index
      %c0_5 = arith.constant 0 : index
      %c0_6 = arith.constant 0 : index
      %c0_7 = arith.constant 0 : index
      %10 = vector.load %arg5[%c0, %c0_5, %c0_6, %c0_7] : memref<1x2x16x64xf32, #tpu.memory_space<vmem>>, vector<1x1x16x64xf32>
      %11 = vector.shape_cast %10 : vector<1x1x16x64xf32> to vector<16x64xf32>
      %12 = arith.index_cast %9 : i32 to index
      %13 = memref.load %arg2[%12] : memref<8xf32, #tpu.memory_space<smem>>
      %14 = arith.index_cast %9 : i32 to index
      %15 = memref.load %arg3[%14] : memref<8xf32, #tpu.memory_space<smem>>
      %cst = arith.constant dense<0.000000e+00> : vector<16xf32>
      %16 = vector.multi_reduction <add>, %11, %cst [1] : vector<16x64xf32> to vector<16xf32>
      %17 = vector.shape_cast %16 : vector<16xf32> to vector<16x1xf32>
      %cst_8 = arith.constant dense<0.000000e+00> : vector<1xf32>
      %18 = vector.multi_reduction <add>, %17, %cst_8 [0] : vector<16x1xf32> to vector<1xf32>
      %19 = vector.shape_cast %18 : vector<1xf32> to vector<1x1xf32>
      %cst_9 = arith.constant 9.765625E-4 : f32
      %20 = vector.broadcast %cst_9 : f32 to vector<1x1xf32>
      %21 = arith.mulf %19, %20 : vector<1x1xf32>
      %22 = vector.broadcast %21 : vector<1x1xf32> to vector<16x64xf32>
      %23 = arith.subf %11, %22 : vector<16x64xf32>
      %24 = arith.mulf %23, %23 : vector<16x64xf32>
      %cst_10 = arith.constant dense<0.000000e+00> : vector<16xf32>
      %25 = vector.multi_reduction <add>, %24, %cst_10 [1] : vector<16x64xf32> to vector<16xf32>
      %26 = vector.shape_cast %25 : vector<16xf32> to vector<16x1xf32>
      %cst_11 = arith.constant dense<0.000000e+00> : vector<1xf32>
      %27 = vector.multi_reduction <add>, %26, %cst_11 [0] : vector<16x1xf32> to vector<1xf32>
      %28 = vector.shape_cast %27 : vector<1xf32> to vector<1x1xf32>
      %cst_12 = arith.constant 9.765625E-4 : f32
      %29 = vector.broadcast %cst_12 : f32 to vector<1x1xf32>
      %30 = arith.mulf %28, %29 : vector<1x1xf32>
      %cst_13 = arith.constant 9.99999974E-6 : f32
      %31 = vector.broadcast %cst_13 : f32 to vector<1x1xf32>
      %32 = arith.addf %30, %31 : vector<1x1xf32>
      %33 = math.rsqrt %32 : vector<1x1xf32>
      %34 = vector.broadcast %13 : f32 to vector<1x1xf32>
      %35 = arith.mulf %33, %34 : vector<1x1xf32>
      %36 = vector.broadcast %35 : vector<1x1xf32> to vector<16x64xf32>
      %37 = arith.mulf %23, %36 : vector<16x64xf32>
      %38 = vector.broadcast %15 : f32 to vector<16x64xf32>
      %39 = arith.addf %37, %38 : vector<16x64xf32>
      %c0_14 = arith.constant 0 : index
      %c0_15 = arith.constant 0 : index
      %c0_16 = arith.constant 0 : index
      %c0_17 = arith.constant 0 : index
      %40 = vector.load %arg6[%c0_14, %c0_15, %c0_16, %c0_17] : memref<1x2x16x64xf32, #tpu.memory_space<vmem>>, vector<1x1x16x64xf32>
      %41 = vector.shape_cast %40 : vector<1x1x16x64xf32> to vector<16x64xf32>
      %42 = vector.shape_cast %39 : vector<16x64xf32> to vector<1x1x16x64xf32>
      tpu.vector_store %arg6[%c0_14, %c0_15, %c0_16, %c0_17], %42 {strides = array<i32>} : memref<1x2x16x64xf32, #tpu.memory_space<vmem>>, vector<1x1x16x64xf32>,
      %c2_i32_18 = arith.constant 2 : i32
      %43 = arith.subi %arg1, %c2_i32_18 : i32
      %c2_i32_19 = arith.constant 2 : i32
      %44 = arith.muli %43, %c2_i32_19 : i32
      %c4_i32_20 = arith.constant 4 : i32
      %45 = arith.addi %c4_i32_20, %44 : i32
      %c1_i32 = arith.constant 1 : i32
      %46 = arith.addi %45, %c1_i32 : i32
      %c0_21 = arith.constant 0 : index
      %c1 = arith.constant 1 : index
      %c0_22 = arith.constant 0 : index
      %c0_23 = arith.constant 0 : index
      %47 = vector.load %arg5[%c0_21, %c1, %c0_22, %c0_23] : memref<1x2x16x64xf32, #tpu.memory_space<vmem>>, vector<1x1x16x64xf32>
      %48 = vector.shape_cast %47 : vector<1x1x16x64xf32> to vector<16x64xf32>
      %49 = arith.index_cast %46 : i32 to index
      %50 = memref.load %arg2[%49] : memref<8xf32, #tpu.memory_space<smem>>
      %51 = arith.index_cast %46 : i32 to index
      %52 = memref.load %arg3[%51] : memref<8xf32, #tpu.memory_space<smem>>
      %cst_24 = arith.constant dense<0.000000e+00> : vector<16xf32>
      %53 = vector.multi_reduction <add>, %48, %cst_24 [1] : vector<16x64xf32> to vector<16xf32>
      %54 = vector.shape_cast %53 : vector<16xf32> to vector<16x1xf32>
      %cst_25 = arith.constant dense<0.000000e+00> : vector<1xf32>
      %55 = vector.multi_reduction <add>, %54, %cst_25 [0] : vector<16x1xf32> to vector<1xf32>
      %56 = vector.shape_cast %55 : vector<1xf32> to vector<1x1xf32>
      %cst_26 = arith.constant 9.765625E-4 : f32
      %57 = vector.broadcast %cst_26 : f32 to vector<1x1xf32>
      %58 = arith.mulf %56, %57 : vector<1x1xf32>
      %59 = vector.broadcast %58 : vector<1x1xf32> to vector<16x64xf32>
      %60 = arith.subf %48, %59 : vector<16x64xf32>
      %61 = arith.mulf %60, %60 : vector<16x64xf32>
      %cst_27 = arith.constant dense<0.000000e+00> : vector<16xf32>
      %62 = vector.multi_reduction <add>, %61, %cst_27 [1] : vector<16x64xf32> to vector<16xf32>
      %63 = vector.shape_cast %62 : vector<16xf32> to vector<16x1xf32>
      %cst_28 = arith.constant dense<0.000000e+00> : vector<1xf32>
      %64 = vector.multi_reduction <add>, %63, %cst_28 [0] : vector<16x1xf32> to vector<1xf32>
      %65 = vector.shape_cast %64 : vector<1xf32> to vector<1x1xf32>
      %cst_29 = arith.constant 9.765625E-4 : f32
      %66 = vector.broadcast %cst_29 : f32 to vector<1x1xf32>
      %67 = arith.mulf %65, %66 : vector<1x1xf32>
      %cst_30 = arith.constant 9.99999974E-6 : f32
      %68 = vector.broadcast %cst_30 : f32 to vector<1x1xf32>
      %69 = arith.addf %67, %68 : vector<1x1xf32>
      %70 = math.rsqrt %69 : vector<1x1xf32>
      %71 = vector.broadcast %50 : f32 to vector<1x1xf32>
      %72 = arith.mulf %70, %71 : vector<1x1xf32>
      %73 = vector.broadcast %72 : vector<1x1xf32> to vector<16x64xf32>
      %74 = arith.mulf %60, %73 : vector<16x64xf32>
      %75 = vector.broadcast %52 : f32 to vector<16x64xf32>
      %76 = arith.addf %74, %75 : vector<16x64xf32>
      %c0_31 = arith.constant 0 : index
      %c1_32 = arith.constant 1 : index
      %c0_33 = arith.constant 0 : index
      %c0_34 = arith.constant 0 : index
      %77 = vector.load %arg6[%c0_31, %c1_32, %c0_33, %c0_34] : memref<1x2x16x64xf32, #tpu.memory_space<vmem>>, vector<1x1x16x64xf32>
      %78 = vector.shape_cast %77 : vector<1x1x16x64xf32> to vector<16x64xf32>
      %79 = vector.shape_cast %76 : vector<16x64xf32> to vector<1x1x16x64xf32>
      tpu.vector_store %arg6[%c0_31, %c1_32, %c0_33, %c0_34], %79 {strides = array<i32>} : memref<1x2x16x64xf32, #tpu.memory_space<vmem>>, vector<1x1x16x64xf32>,
    } else {
    }
    return
  }
  func.func @transform_0(%arg0: i32, %arg1: i32, %arg2: memref<8xf32, #tpu.memory_space<smem>>, %arg3: memref<8xf32, #tpu.memory_space<smem>>) -> (i32, i32, i32, i32) {
    %c1_i32 = arith.constant 1 : i32
    %0 = arith.minsi %arg1, %c1_i32 : i32
    %c0_i32 = arith.constant 0 : i32
    %c0_i32_0 = arith.constant 0 : i32
    %c0_i32_1 = arith.constant 0 : i32
    return %arg0, %0, %c0_i32, %c0_i32_0 : i32, i32, i32, i32
  }
  func.func @transform_1(%arg0: i32, %arg1: i32, %arg2: memref<8xf32, #tpu.memory_space<smem>>, %arg3: memref<8xf32, #tpu.memory_space<smem>>) -> (i32, i32, i32, i32) {
    %c2_i32 = arith.constant 2 : i32
    %0 = arith.subi %arg1, %c2_i32 : i32
    %c0_i32 = arith.constant 0 : i32
    %1 = arith.maxsi %0, %c0_i32 : i32
    %c0_i32_0 = arith.constant 0 : i32
    %c0_i32_1 = arith.constant 0 : i32
    %c0_i32_2 = arith.constant 0 : i32
    return %arg0, %1, %c0_i32_0, %c0_i32_1 : i32, i32, i32, i32
  }
  func.func @transform_2(%arg0: i32, %arg1: i32, %arg2: memref<8xf32, #tpu.memory_space<smem>>, %arg3: memref<8xf32, #tpu.memory_space<smem>>) -> (i32, i32, i32, i32) {
    %c0_i32 = arith.constant 0 : i32
    %c0_i32_0 = arith.constant 0 : i32
    %c0_i32_1 = arith.constant 0 : i32
    return %arg0, %arg1, %c0_i32, %c0_i32_0 : i32, i32, i32, i32
  }
}

</mosaic_0001>

<llo_original>
// kernel: tpu_custom_call.1
$region0: #{tpu_custom_call.1}
  #allocation0 [shape = 'u32[]', space=smem, size = 0x4, offset = 0x4, fixed_abs, tag = 'smem constant byte address 0x4 - core index']
  #allocation1 [shape = 'u32[144,128]{1,0:T(1,128)}', space=vmem, size = 0x12000, scoped, tag = 'internal scratch']
  #allocation2 [shape = 's32[1]{0}', space=sflag, size = 0x4, scoped, tag = 'scoped memory for tpu_custom_call.1']
  #allocation3 [shape = 'u8[512]{0}', space=smem, size = 0x200, scoped, tag = 'prefetched SMEM operand 0']
  #allocation4 [shape = 'u8[512]{0}', space=smem, size = 0x200, scoped, tag = 'prefetched SMEM operand 1']
  %s0 = inlined_call_operand.hbm [shape: f32[8], index: 0, kind: input, shape index: {}]
  %s1 = inlined_call_operand.hbm [shape: f32[8], index: 1, kind: input, shape index: {}]
  %s2 = inlined_call_operand.hbm [shape: f32[2,4,16,16], index: 2, kind: input, shape index: {}]
  %s3 = inlined_call_operand.hbm [shape: f32[2,4,16,64], index: 3, kind: input, shape index: {}]
  %s4 = inlined_call_operand.hbm [shape: f32[2,8,16,64], index: 4, kind: output, shape index: {}]
  %s5 = sld [smem:[#allocation0]]
  $region57: #{tpu_custom_call.1} parent=0
    _
  %s7 = ssub.s32 1, %s5
  %s8 = scalar_select 0, %s7, %s5
  %10 = dma.hbm_to_smem %s0, 16, [#allocation3], [#allocation2]
  %12 = dma.hbm_to_smem %s1, 16, [#allocation4], [#allocation2]
  %13 = dma.done [#allocation2], 32
  %14 = sfence
  $region1: #{tpu_custom_call.1} parent=0
    #allocation5 [shape = 'u8[32768]{0}', space=vmem, size = 0x8000, scoped, tag = 'input window, operand 2']
    #allocation6 [shape = 's32[2]{0}', space=sflag, size = 0x8, scoped, tag = 'scoped memory for tpu_custom_call.1']
    #allocation7 [shape = 's32[2]{0}', space=sflag, size = 0x8, scoped, tag = 'scoped memory for tpu_custom_call.1']
    #allocation8 [shape = 'u8[32768]{0}', space=vmem, size = 0x8000, scoped, tag = 'input window, operand 3']
    #allocation9 [shape = 's32[2]{0}', space=sflag, size = 0x8, scoped, tag = 'scoped memory for tpu_custom_call.1']
    #allocation10 [shape = 'u8[32768]{0}', space=vmem, size = 0x8000, scoped, tag = 'output window, operand 0']
    %15 = vsyncpa [#allocation6], 0
    %s16 = scalar_lea.sflag [#allocation6], 1
    %17 = vsyncpa %s16, 0
    %18 = vsyncpa [#allocation9], 0
    %s19 = scalar_lea.sflag [#allocation9], 1
    %20 = vsyncpa %s19, 0
    %21 = vsyncpa [#allocation7], 0
    %s22 = scalar_lea.sflag [#allocation7], 1
    %23 = vsyncpa %s22, 0
    loop: start=0, step=1, limit=10
    $region2: #{tpu_custom_call.1} parent=1 // loop_pre_header
      _
    $region3: #{tpu_custom_call.1} parent=1 // loop_header
      %s25 = sphi 0, %s29
      %p26 = scmp.ge.s32.totalorder %s25, 10
      %s32 = sphi 0, %s44
      %s33 = sphi 0, %s40
      %s34 = sphi 0, %s32
      %s35 = sphi 0, %s33
      %s36 = sphi 0, %s34
      %s37 = sphi 0, %s35
      %s53 = sphi 0, %s55
      %s56 = sphi 0, %s53
      %s57 = sphi 0, %s56
      %s73 = sphi 0, %s57
      %s87 = sphi 0, %s89
      %s90 = sphi 0, %s87
      %s91 = sphi 0, %s90
      %s107 = sphi 0, %s91
      %s115 = sphi 0, %s117
      %s118 = sphi 0, %s115
      %s119 = sphi 0, %s118
      %s135 = sphi 0, %s119
    $region4: #{tpu_custom_call.1} parent=1 // loop_header_branch
      %28 = sbr.rel (%p26) target = $region8
    $region5: #{tpu_custom_call.1} parent=1 // loop_body
      %s30 = ssub.s32 %s25, 1
      %s31 = ssub.s32 %s25, 2
      %s38 = sadd.s32 1, %s33
      %p39 = scmp.ge.s32.totalorder %s38, 4
      %s40 = scalar_select %p39, 0, %s38
      %s41 = sadd.s32 1, %s32
      %s42 = scalar_select %p39, %s41, %s32
      %p43 = scmp.ge.s32.totalorder %s42, 2
      %s44 = scalar_select %p43, 0, %s42
      %p45 = scmp.lt.s32.totalorder %s33, 1
      %s46 = scalar_select %p45, %s33, 1
      %p47 = scmp.lt.s32.totalorder %s40, 1
      %s48 = scalar_select %p47, %s40, 1
      %s49 = ssub.s32 %s32, %s44
      %s50 = ssub.s32 %s46, %s48
      %s51 = sor.u32 %s49, %s50
      %p52 = scmp.eq.s32.totalorder %s51, 0
      %s54 = sadd.s32 %s53, 1
      %s55 = scalar_select %p52, %s53, %s54
      %p58 = pneg %p52
      %p59 = scmp.eq.s32.totalorder %s25, 7
      %p60 = por %p58, %p59
      %p61 = scmp.ne.s32.totalorder %s53, %s56
      %p62 = scmp.eq.s32.totalorder %s25, 0
      %p63 = por %p61, %p62
      %p64 = scmp.ne.s32.totalorder %s53, %s56
      %p65 = scmp.eq.s32.totalorder %s30, 7
      %p66 = por %p64, %p65
      %p67 = scmp.ne.s32.totalorder %s56, %s57
      %p68 = scmp.eq.s32.totalorder %s30, 0
      %p69 = por %p67, %p68
      %p70 = scmp.ne.s32.totalorder %s56, %s57
      %p71 = scmp.eq.s32.totalorder %s31, 7
      %p72 = por %p70, %p71
      %p74 = scmp.ne.s32.totalorder %s57, %s73
      %p75 = scmp.eq.s32.totalorder %s31, 0
      %p76 = por %p74, %p75
      %s77 = ssub.s32 %s33, 2
      %p78 = scmp.gt.s32.totalorder %s77, 0
      %s79 = scalar_select %p78, %s77, 0
      %s80 = ssub.s32 %s40, 2
      %p81 = scmp.gt.s32.totalorder %s80, 0
      %s82 = scalar_select %p81, %s80, 0
      %s83 = ssub.s32 %s32, %s44
      %s84 = ssub.s32 %s79, %s82
      %s85 = sor.u32 %s83, %s84
      %p86 = scmp.eq.s32.totalorder %s85, 0
      %s88 = sadd.s32 %s87, 1
      %s89 = scalar_select %p86, %s87, %s88
      %p92 = pneg %p86
      %p93 = scmp.eq.s32.totalorder %s25, 7
      %p94 = por %p92, %p93
      %p95 = scmp.ne.s32.totalorder %s87, %s90
      %p96 = scmp.eq.s32.totalorder %s25, 0
      %p97 = por %p95, %p96
      %p98 = scmp.ne.s32.totalorder %s87, %s90
      %p99 = scmp.eq.s32.totalorder %s30, 7
      %p100 = por %p98, %p99
      %p101 = scmp.ne.s32.totalorder %s90, %s91
      %p102 = scmp.eq.s32.totalorder %s30, 0
      %p103 = por %p101, %p102
      %p104 = scmp.ne.s32.totalorder %s90, %s91
      %p105 = scmp.eq.s32.totalorder %s31, 7
      %p106 = por %p104, %p105
      %p108 = scmp.ne.s32.totalorder %s91, %s107
      %p109 = scmp.eq.s32.totalorder %s31, 0
      %p110 = por %p108, %p109
      %s111 = ssub.s32 %s32, %s44
      %s112 = ssub.s32 %s33, %s40
      %s113 = sor.u32 %s111, %s112
      %p114 = scmp.eq.s32.totalorder %s113, 0
      %s116 = sadd.s32 %s115, 1
      %s117 = scalar_select %p114, %s115, %s116
      %p120 = pneg %p114
      %p121 = scmp.eq.s32.totalorder %s25, 7
      %p122 = por %p120, %p121
      %p123 = scmp.ne.s32.totalorder %s115, %s118
      %p124 = scmp.eq.s32.totalorder %s25, 0
      %p125 = por %p123, %p124
      %p126 = scmp.ne.s32.totalorder %s115, %s118
      %p127 = scmp.eq.s32.totalorder %s30, 7
      %p128 = por %p126, %p127
      %p129 = scmp.ne.s32.totalorder %s118, %s119
      %p130 = scmp.eq.s32.totalorder %s30, 0
      %p131 = por %p129, %p130
      %p132 = scmp.ne.s32.totalorder %s118, %s119
      %p133 = scmp.eq.s32.totalorder %s31, 7
      %p134 = por %p132, %p133
      %p136 = scmp.ne.s32.totalorder %s119, %s135
      %p137 = scmp.eq.s32.totalorder %s31, 0
      %p138 = por %p136, %p137
      %p139 = scmp.le.s32.totalorder 1, %s25
      %p140 = scmp.lt.s32.totalorder %s25, 9
      %p141 = pnand %p139, %p140
      %p142 = pneg %p141
      // Predicated region
      $region9: #{tpu_custom_call.1} parent=5 // pred_check
        _
      $region10: #{tpu_custom_call.1} parent=5 // pred_check_branch
        %144 = sbr.rel (%p141) target = $region12
      $region11: #{tpu_custom_call.1} parent=5 // pred_region
        %s145 = ssub.s32 %s25, 1
      $region12: #{tpu_custom_call.1} parent=5 // pred_fallthru
        _
      %p146 = scmp.lt.s32.totalorder %s25, 8
      // Predicated region
      $region13: #{tpu_custom_call.1} parent=5 // pred_check
        %p147 = pneg %p146
      $region14: #{tpu_custom_call.1} parent=5 // pred_check_branch
        %149 = sbr.rel (%p147) target = $region16
      $region15: #{tpu_custom_call.1} parent=5 // pred_region
        // Predicated region
        $region17: #{tpu_custom_call.1} parent=15 // pred_check
          %p150 = pneg %p63
        $region18: #{tpu_custom_call.1} parent=15 // pred_check_branch
          %152 = sbr.rel (%p150) target = $region20
        $region19: #{tpu_custom_call.1} parent=15 // pred_region
          %s153 = sand.u32 %s53, 1
          %s154 = scalar_lea.sflag [#allocation6], %s153
          %s155 = sand.u32 %s53, 1
          %s156 = smul.addr %s155, 32
          %s157 = scalar_lea.vmem [#allocation5], %s156
          %p158 = scmp.lt.s32.totalorder %s33, 1
          %s159 = scalar_select %p158, %s33, 1
          %s160 = smul.u32 2, %s159
          %s162 = ssub.s32 512, 512
          %163 = vsyncadd %s154, %s162
          %s164 = smul.addr %s160, 2
          %s165 = smul.addr %s32, 8
          %s166 = sadd.s32 %s164, %s165
          %s167 = smul.addr %s166, 128
          %s168 = scalar_lea.hbm %s2, %s167
          %s169 = sshll.u32 %s157, 4
          %s170 = int_to_ptr.vmem [resolvable:$true] %s169
          %175 = dma.hbm_to_vmem [thread:$0]  %s168, 512, %s170, %s154, 128, 128, 8
        $region20: #{tpu_custom_call.1} parent=15 // pred_fallthru
          _
        // Predicated region
        $region21: #{tpu_custom_call.1} parent=15 // pred_check
          %p176 = pneg %p97
        $region22: #{tpu_custom_call.1} parent=15 // pred_check_branch
          %178 = sbr.rel (%p176) target = $region24
        $region23: #{tpu_custom_call.1} parent=15 // pred_region
          %s179 = sand.u32 %s87, 1
          %s180 = scalar_lea.sflag [#allocation9], %s179
          %s181 = sand.u32 %s87, 1
          %s182 = smul.addr %s181, 32
          %s183 = scalar_lea.vmem [#allocation8], %s182
          %s184 = ssub.s32 %s33, 2
          %p185 = scmp.gt.s32.totalorder %s184, 0
          %s186 = scalar_select %p185, %s184, 0
          %s187 = smul.u32 2, %s186
          %s189 = ssub.s32 512, 512
          %190 = vsyncadd %s180, %s189
          %s191 = smul.addr %s187, 2
          %s192 = smul.addr %s32, 8
          %s193 = sadd.s32 %s191, %s192
          %s194 = smul.addr %s193, 128
          %s195 = scalar_lea.hbm %s3, %s194
          %s196 = sshll.u32 %s183, 4
          %s197 = int_to_ptr.vmem [resolvable:$true] %s196
          %202 = dma.hbm_to_vmem [thread:$0]  %s195, 512, %s197, %s180, 128, 128, 8
        $region24: #{tpu_custom_call.1} parent=15 // pred_fallthru
          _
      $region16: #{tpu_custom_call.1} parent=5 // pred_fallthru
        _
      %p203 = scmp.le.s32.totalorder 1, %s25
      %p204 = scmp.lt.s32.totalorder %s25, 9
      %p205 = pnand %p203, %p204
      %p206 = pneg %p205
      // Predicated region
      $region25: #{tpu_custom_call.1} parent=5 // pred_check
        _
      $region26: #{tpu_custom_call.1} parent=5 // pred_check_branch
        %208 = sbr.rel (%p205) target = $region28
      $region27: #{tpu_custom_call.1} parent=5 // pred_region
        %s209 = ssub.s32 %s25, 1
        %s210 = sand.u32 %s56, 1
        %s211 = scalar_lea.sflag [#allocation6], %s210
        %s212 = sand.u32 %s56, 1
        %s213 = smul.addr %s212, 32
        %s214 = scalar_lea.vmem [#allocation5], %s213
        // Predicated region
        $region29: #{tpu_custom_call.1} parent=27 // pred_check
          %p215 = pneg %p69
        $region30: #{tpu_custom_call.1} parent=27 // pred_check_branch
          %217 = sbr.rel (%p215) target = $region32
        $region31: #{tpu_custom_call.1} parent=27 // pred_region
          %218 = dma.done %s211, 512
        $region32: #{tpu_custom_call.1} parent=27 // pred_fallthru
          _
        %s219 = sand.u32 %s90, 1
        %s220 = scalar_lea.sflag [#allocation9], %s219
        %s221 = sand.u32 %s90, 1
        %s222 = smul.addr %s221, 32
        %s223 = scalar_lea.vmem [#allocation8], %s222
        // Predicated region
        $region33: #{tpu_custom_call.1} parent=27 // pred_check
          %p224 = pneg %p103
        $region34: #{tpu_custom_call.1} parent=27 // pred_check_branch
          %226 = sbr.rel (%p224) target = $region36
        $region35: #{tpu_custom_call.1} parent=27 // pred_region
          %227 = dma.done %s220, 512
        $region36: #{tpu_custom_call.1} parent=27 // pred_fallthru
          _
        %s228 = sand.u32 %s56, 1
        %s229 = scalar_lea.sflag [#allocation6], %s228
        %s230 = sand.u32 %s56, 1
        %s231 = smul.addr %s230, 32
        %s232 = scalar_lea.vmem [#allocation5], %s231
        %p233 = pneg %p69
        %p234 = pneg %p66
        %s235 = sand.u32 %s90, 1
        %s236 = scalar_lea.sflag [#allocation9], %s235
        %s237 = sand.u32 %s90, 1
        %s238 = smul.addr %s237, 32
        %s239 = scalar_lea.vmem [#allocation8], %s238
        %p240 = pneg %p103
        %p241 = pneg %p100
        %p242 = pneg %p131
        %p243 = pneg %p128
        %s244 = sand.u32 %s118, 1
        %s245 = scalar_lea.sflag [#allocation7], %s244
        %s246 = sand.u32 %s118, 1
        %s247 = smul.addr %s246, 32
        %s248 = scalar_lea.vmem [#allocation10], %s247
        %p249 = scmp.lt.s32.totalorder %s35, 1
        %s250 = scalar_select %p249, %s35, 1
        %s251 = smul.u32 2, %s250
        %s252 = ssub.s32 %s35, 2
        %p253 = scmp.gt.s32.totalorder %s252, 0
        %s254 = scalar_select %p253, %s252, 0
        %s255 = smul.u32 2, %s254
        %s256 = smul.u32 2, %s35
        %p257 = scmp.lt.s32.totalorder %s35, 2
        // Predicated region
        $region37: #{tpu_custom_call.1} parent=27 // pred_check
          %p258 = pneg %p257
        $region38: #{tpu_custom_call.1} parent=27 // pred_check_branch
          %260 = sbr.rel (%p258) target = $region40
        $region39: #{tpu_custom_call.1} parent=27 // pred_region
          %s261 = smul.u32 %s35, 2
          %v262 = vld [vmem:[%s214] sm:$0xff]
          %v263 = vld [vmem:[%s214 + $0x8] sm:$0xff]
          %s264 = sld [smem:[#allocation3 + %s261]]
          %s265 = sld [smem:[#allocation4 + %s261]]
          %vm266 = vcmask 130048
          %v267 = vsel %vm266, %v262, 0.0
          %268 = vadd.xlane.f32.xlu0 %v267
          %v269 = vpop.xlane.xlu0 %268
          %v270 = vsel %vm266, %v263, 0.0
          %271 = vadd.xlane.f32.xlu0 %v270
          %v272 = vpop.xlane.xlu0 %271
          %v273 = vadd.f32 %v269, %v272
          %v274 = vrot.slane %v273, 4
          %v275 = vadd.f32 %v273, %v274
          %v276 = vrot.slane %v275, 2
          %v277 = vadd.f32 %v275, %v276
          %v278 = vrot.slane %v277, 1
          %v279 = vadd.f32 %v277, %v278
          %v280 = vmul.f32 %v279, 0.00390625
          %v281 = vsub.f32 %v262, %v280
          %v282 = vsub.f32 %v263, %v280
          %v283 = vmul.f32 %v281, %v281
          %v284 = vmul.f32 %v282, %v282
          %v285 = vsel %vm266, %v283, 0.0
          %286 = vadd.xlane.f32.xlu0 %v285
          %v287 = vpop.xlane.xlu0 %286
          %v288 = vsel %vm266, %v284, 0.0
          %289 = vadd.xlane.f32.xlu0 %v288
          %v290 = vpop.xlane.xlu0 %289
          %v291 = vadd.f32 %v287, %v290
          %v292 = vrot.slane %v291, 4
          %v293 = vadd.f32 %v291, %v292
          %v294 = vrot.slane %v293, 2
          %v295 = vadd.f32 %v293, %v294
          %v296 = vrot.slane %v295, 1
          %v297 = vadd.f32 %v295, %v296
          %v298 = vmul.f32 %v297, 0.00390625
          %v299 = vadd.f32 %v298, 1e-05
          %v300 = vrsqrt.pop %v299
          %v301 = vstv %s264
          %v302 = vmul.f32 %v300, %v301
          %v303 = vmul.f32 %v281, %v302
          %v304 = vmul.f32 %v282, %v302
          %v305 = vstv %s265
          %v306 = vadd.f32 %v303, %v305
          %v307 = vadd.f32 %v304, %v305
          %v308 = vlaneseq
          %v309 = vshrl.u32 %v308, 7
          %v310 = vsub.s32 0, %v309
          %v311 = vrot.slane %v306, %v310
          %313 = vbcast.lane.b32.xlu0 %v311, 256
          %v314 = vpop.permute.xlu0 %313
          %s316 = sor.u32 256, 8
          %317 = vbcast.lane.b32.xlu0 %v311, %s316
          %v318 = vpop.permute.xlu0 %317
          %v319 = vlaneseq
          %v320 = vshrl.u32 %v319, 7
          %v321 = vsub.s32 1, %v320
          %v322 = vrot.slane %v306, %v321
          %324 = vbcast.lane.b32.xlu0 %v322, 256
          %v325 = vpop.permute.xlu0 %324
          %s327 = sor.u32 256, 8
          %328 = vbcast.lane.b32.xlu0 %v322, %s327
          %v329 = vpop.permute.xlu0 %328
          %v330 = vlaneseq
          %v331 = vshrl.u32 %v330, 7
          %v332 = vsub.s32 2, %v331
          %v333 = vrot.slane %v306, %v332
          %335 = vbcast.lane.b32.xlu0 %v333, 256
          %v336 = vpop.permute.xlu0 %335
          %s338 = sor.u32 256, 8
          %339 = vbcast.lane.b32.xlu0 %v333, %s338
          %v340 = vpop.permute.xlu0 %339
          %v341 = vlaneseq
          %v342 = vshrl.u32 %v341, 7
          %v343 = vsub.s32 3, %v342
          %v344 = vrot.slane %v306, %v343
          %346 = vbcast.lane.b32.xlu0 %v344, 256
          %v347 = vpop.permute.xlu0 %346
          %s349 = sor.u32 256, 8
          %350 = vbcast.lane.b32.xlu0 %v344, %s349
          %v351 = vpop.permute.xlu0 %350
          %v352 = vlaneseq
          %v353 = vshrl.u32 %v352, 7
          %v354 = vsub.s32 4, %v353
          %v355 = vrot.slane %v306, %v354
          %357 = vbcast.lane.b32.xlu0 %v355, 256
          %v358 = vpop.permute.xlu0 %357
          %s360 = sor.u32 256, 8
          %361 = vbcast.lane.b32.xlu0 %v355, %s360
          %v362 = vpop.permute.xlu0 %361
          %v363 = vlaneseq
          %v364 = vshrl.u32 %v363, 7
          %v365 = vsub.s32 5, %v364
          %v366 = vrot.slane %v306, %v365
          %368 = vbcast.lane.b32.xlu0 %v366, 256
          %v369 = vpop.permute.xlu0 %368
          %s371 = sor.u32 256, 8
          %372 = vbcast.lane.b32.xlu0 %v366, %s371
          %v373 = vpop.permute.xlu0 %372
          %v374 = vlaneseq
          %v375 = vshrl.u32 %v374, 7
          %v376 = vsub.s32 6, %v375
          %v377 = vrot.slane %v306, %v376
          %379 = vbcast.lane.b32.xlu0 %v377, 256
          %v380 = vpop.permute.xlu0 %379
          %s382 = sor.u32 256, 8
          %383 = vbcast.lane.b32.xlu0 %v377, %s382
          %v384 = vpop.permute.xlu0 %383
          %v385 = vlaneseq
          %v386 = vshrl.u32 %v385, 7
          %v387 = vsub.s32 7, %v386
          %v388 = vrot.slane %v306, %v387
          %390 = vbcast.lane.b32.xlu0 %v388, 256
          %v391 = vpop.permute.xlu0 %390
          %s393 = sor.u32 256, 8
          %394 = vbcast.lane.b32.xlu0 %v388, %s393
          %v395 = vpop.permute.xlu0 %394
          %v396 = vlaneseq
          %v397 = vshrl.u32 %v396, 7
          %v398 = vsub.s32 0, %v397
          %v399 = vrot.slane %v307, %v398
          %401 = vbcast.lane.b32.xlu0 %v399, 256
          %v402 = vpop.permute.xlu0 %401
          %s404 = sor.u32 256, 8
          %405 = vbcast.lane.b32.xlu0 %v399, %s404
          %v406 = vpop.permute.xlu0 %405
          %v407 = vlaneseq
          %v408 = vshrl.u32 %v407, 7
          %v409 = vsub.s32 1, %v408
          %v410 = vrot.slane %v307, %v409
          %412 = vbcast.lane.b32.xlu0 %v410, 256
          %v413 = vpop.permute.xlu0 %412
          %s415 = sor.u32 256, 8
          %416 = vbcast.lane.b32.xlu0 %v410, %s415
          %v417 = vpop.permute.xlu0 %416
          %v418 = vlaneseq
          %v419 = vshrl.u32 %v418, 7
          %v420 = vsub.s32 2, %v419
          %v421 = vrot.slane %v307, %v420
          %423 = vbcast.lane.b32.xlu0 %v421, 256
          %v424 = vpop.permute.xlu0 %423
          %s426 = sor.u32 256, 8
          %427 = vbcast.lane.b32.xlu0 %v421, %s426
          %v428 = vpop.permute.xlu0 %427
          %v429 = vlaneseq
          %v430 = vshrl.u32 %v429, 7
          %v431 = vsub.s32 3, %v430
          %v432 = vrot.slane %v307, %v431
          %434 = vbcast.lane.b32.xlu0 %v432, 256
          %v435 = vpop.permute.xlu0 %434
          %s437 = sor.u32 256, 8
          %438 = vbcast.lane.b32.xlu0 %v432, %s437
          %v439 = vpop.permute.xlu0 %438
          %v440 = vlaneseq
          %v441 = vshrl.u32 %v440, 7
          %v442 = vsub.s32 4, %v441
          %v443 = vrot.slane %v307, %v442
          %445 = vbcast.lane.b32.xlu0 %v443, 256
          %v446 = vpop.permute.xlu0 %445
          %s448 = sor.u32 256, 8
          %449 = vbcast.lane.b32.xlu0 %v443, %s448
          %v450 = vpop.permute.xlu0 %449
          %v451 = vlaneseq
          %v452 = vshrl.u32 %v451, 7
          %v453 = vsub.s32 5, %v452
          %v454 = vrot.slane %v307, %v453
          %456 = vbcast.lane.b32.xlu0 %v454, 256
          %v457 = vpop.permute.xlu0 %456
          %s459 = sor.u32 256, 8
          %460 = vbcast.lane.b32.xlu0 %v454, %s459
          %v461 = vpop.permute.xlu0 %460
          %v462 = vlaneseq
          %v463 = vshrl.u32 %v462, 7
          %v464 = vsub.s32 6, %v463
          %v465 = vrot.slane %v307, %v464
          %467 = vbcast.lane.b32.xlu0 %v465, 256
          %v468 = vpop.permute.xlu0 %467
          %s470 = sor.u32 256, 8
          %471 = vbcast.lane.b32.xlu0 %v465, %s470
          %v472 = vpop.permute.xlu0 %471
          %v473 = vlaneseq
          %v474 = vshrl.u32 %v473, 7
          %v475 = vsub.s32 7, %v474
          %v476 = vrot.slane %v307, %v475
          %478 = vbcast.lane.b32.xlu0 %v476, 256
          %v479 = vpop.permute.xlu0 %478
          %s481 = sor.u32 256, 8
          %482 = vbcast.lane.b32.xlu0 %v476, %s481
          %v483 = vpop.permute.xlu0 %482
          %v484 = vcombine.low %v314, %v336
          %v485 = vcombine.high %v314, %v336
          %v487 = vunpack.c.l.s4 1983009808
          %v488 = vunpack.c.0.s8 %v487
          %v489 = vlaneseq
          %v490 = vshrl.u32 %v489, 7
          %v491 = vsub.s32 %v488, %v490
          %v492 = vrot.slane %v484, %v491
          %v494 = vunpack.c.l.s4 1983009808
          %v495 = vunpack.c.0.s8 %v494
          %v496 = vlaneseq
          %v497 = vshrl.u32 %v496, 7
          %v498 = vsub.s32 %v495, %v497
          %v499 = vrot.slane %v485, %v498
          %v500 = vcombine.low %v325, %v347
          %v501 = vcombine.high %v325, %v347
          %v503 = vunpack.c.l.s4 1983009808
          %v504 = vunpack.c.0.s8 %v503
          %v505 = vlaneseq
          %v506 = vshrl.u32 %v505, 7
          %v507 = vsub.s32 %v504, %v506
          %v508 = vrot.slane %v500, %v507
          %v510 = vunpack.c.l.s4 1983009808
          %v511 = vunpack.c.0.s8 %v510
          %v512 = vlaneseq
          %v513 = vshrl.u32 %v512, 7
          %v514 = vsub.s32 %v511, %v513
          %v515 = vrot.slane %v501, %v514
          %v516 = vcombine.low %v358, %v380
          %v517 = vcombine.high %v358, %v380
          %v519 = vunpack.c.l.s4 1983009808
          %v520 = vunpack.c.0.s8 %v519
          %v521 = vlaneseq
          %v522 = vshrl.u32 %v521, 7
          %v523 = vsub.s32 %v520, %v522
          %v524 = vrot.slane %v516, %v523
          %v526 = vunpack.c.l.s4 1983009808
          %v527 = vunpack.c.0.s8 %v526
          %v528 = vlaneseq
          %v529 = vshrl.u32 %v528, 7
          %v530 = vsub.s32 %v527, %v529
          %v531 = vrot.slane %v517, %v530
          %v532 = vcombine.low %v369, %v391
          %v533 = vcombine.high %v369, %v391
          %v535 = vunpack.c.l.s4 1983009808
          %v536 = vunpack.c.0.s8 %v535
          %v537 = vlaneseq
          %v538 = vshrl.u32 %v537, 7
          %v539 = vsub.s32 %v536, %v538
          %v540 = vrot.slane %v532, %v539
          %v542 = vunpack.c.l.s4 1983009808
          %v543 = vunpack.c.0.s8 %v542
          %v544 = vlaneseq
          %v545 = vshrl.u32 %v544, 7
          %v546 = vsub.s32 %v543, %v545
          %v547 = vrot.slane %v533, %v546
          %v548 = vcombine.low %v492, %v508
          %v549 = vcombine.high %v492, %v508
          %v551 = vunpack.c.l.s4 1934713408
          %v552 = vunpack.c.0.s8 %v551
          %v553 = vlaneseq
          %v554 = vshrl.u32 %v553, 7
          %v555 = vsub.s32 %v552, %v554
          %v556 = vrot.slane %v548, %v555
          %v558 = vunpack.c.l.s4 1934713408
          %v559 = vunpack.c.0.s8 %v558
          %v560 = vlaneseq
          %v561 = vshrl.u32 %v560, 7
          %v562 = vsub.s32 %v559, %v561
          %v563 = vrot.slane %v549, %v562
          %v564 = vcombine.low %v499, %v515
          %v565 = vcombine.high %v499, %v515
          %v567 = vunpack.c.l.s4 1934713408
          %v568 = vunpack.c.0.s8 %v567
          %v569 = vlaneseq
          %v570 = vshrl.u32 %v569, 7
          %v571 = vsub.s32 %v568, %v570
          %v572 = vrot.slane %v564, %v571
          %v574 = vunpack.c.l.s4 1934713408
          %v575 = vunpack.c.0.s8 %v574
          %v576 = vlaneseq
          %v577 = vshrl.u32 %v576, 7
          %v578 = vsub.s32 %v575, %v577
          %v579 = vrot.slane %v565, %v578
          %v580 = vcombine.low %v524, %v540
          %v581 = vcombine.high %v524, %v540
          %v583 = vunpack.c.l.s4 1934713408
          %v584 = vunpack.c.0.s8 %v583
          %v585 = vlaneseq
          %v586 = vshrl.u32 %v585, 7
          %v587 = vsub.s32 %v584, %v586
          %v588 = vrot.slane %v580, %v587
          %v590 = vunpack.c.l.s4 1934713408
          %v591 = vunpack.c.0.s8 %v590
          %v592 = vlaneseq
          %v593 = vshrl.u32 %v592, 7
          %v594 = vsub.s32 %v591, %v593
          %v595 = vrot.slane %v581, %v594
          %v596 = vcombine.low %v531, %v547
          %v597 = vcombine.high %v531, %v547
          %v599 = vunpack.c.l.s4 1934713408
          %v600 = vunpack.c.0.s8 %v599
          %v601 = vlaneseq
          %v602 = vshrl.u32 %v601, 7
          %v603 = vsub.s32 %v600, %v602
          %v604 = vrot.slane %v596, %v603
          %v606 = vunpack.c.l.s4 1934713408
          %v607 = vunpack.c.0.s8 %v606
          %v608 = vlaneseq
          %v609 = vshrl.u32 %v608, 7
          %v610 = vsub.s32 %v607, %v609
          %v611 = vrot.slane %v597, %v610
          %v612 = vcombine.low %v556, %v588
          %v613 = vcombine.high %v556, %v588
          %v614 = vcombine.low %v563, %v595
          %v615 = vcombine.high %v563, %v595
          %v616 = vcombine.low %v572, %v604
          %v617 = vcombine.high %v572, %v604
          %v618 = vcombine.low %v579, %v611
          %v619 = vcombine.high %v579, %v611
          %v620 = vcombine.low %v402, %v424
          %v621 = vcombine.high %v402, %v424
          %v623 = vunpack.c.l.s4 1983009808
          %v624 = vunpack.c.0.s8 %v623
          %v625 = vlaneseq
          %v626 = vshrl.u32 %v625, 7
          %v627 = vsub.s32 %v624, %v626
          %v628 = vrot.slane %v620, %v627
          %v630 = vunpack.c.l.s4 1983009808
          %v631 = vunpack.c.0.s8 %v630
          %v632 = vlaneseq
          %v633 = vshrl.u32 %v632, 7
          %v634 = vsub.s32 %v631, %v633
          %v635 = vrot.slane %v621, %v634
          %v636 = vcombine.low %v413, %v435
          %v637 = vcombine.high %v413, %v435
          %v639 = vunpack.c.l.s4 1983009808
          %v640 = vunpack.c.0.s8 %v639
          %v641 = vlaneseq
          %v642 = vshrl.u32 %v641, 7
          %v643 = vsub.s32 %v640, %v642
          %v644 = vrot.slane %v636, %v643
          %v646 = vunpack.c.l.s4 1983009808
          %v647 = vunpack.c.0.s8 %v646
          %v648 = vlaneseq
          %v649 = vshrl.u32 %v648, 7
          %v650 = vsub.s32 %v647, %v649
          %v651 = vrot.slane %v637, %v650
          %v652 = vcombine.low %v446, %v468
          %v653 = vcombine.high %v446, %v468
          %v655 = vunpack.c.l.s4 1983009808
          %v656 = vunpack.c.0.s8 %v655
          %v657 = vlaneseq
          %v658 = vshrl.u32 %v657, 7
          %v659 = vsub.s32 %v656, %v658
          %v660 = vrot.slane %v652, %v659
          %v662 = vunpack.c.l.s4 1983009808
          %v663 = vunpack.c.0.s8 %v662
          %v664 = vlaneseq
          %v665 = vshrl.u32 %v664, 7
          %v666 = vsub.s32 %v663, %v665
          %v667 = vrot.slane %v653, %v666
          %v668 = vcombine.low %v457, %v479
          %v669 = vcombine.high %v457, %v479
          %v671 = vunpack.c.l.s4 1983009808
          %v672 = vunpack.c.0.s8 %v671
          %v673 = vlaneseq
          %v674 = vshrl.u32 %v673, 7
          %v675 = vsub.s32 %v672, %v674
          %v676 = vrot.slane %v668, %v675
          %v678 = vunpack.c.l.s4 1983009808
          %v679 = vunpack.c.0.s8 %v678
          %v680 = vlaneseq
          %v681 = vshrl.u32 %v680, 7
          %v682 = vsub.s32 %v679, %v681
          %v683 = vrot.slane %v669, %v682
          %v684 = vcombine.low %v628, %v644
          %v685 = vcombine.high %v628, %v644
          %v687 = vunpack.c.l.s4 1934713408
          %v688 = vunpack.c.0.s8 %v687
          %v689 = vlaneseq
          %v690 = vshrl.u32 %v689, 7
          %v691 = vsub.s32 %v688, %v690
          %v692 = vrot.slane %v684, %v691
          %v694 = vunpack.c.l.s4 1934713408
          %v695 = vunpack.c.0.s8 %v694
          %v696 = vlaneseq
          %v697 = vshrl.u32 %v696, 7
          %v698 = vsub.s32 %v695, %v697
          %v699 = vrot.slane %v685, %v698
          %v700 = vcombine.low %v635, %v651
          %v701 = vcombine.high %v635, %v651
          %v703 = vunpack.c.l.s4 1934713408
          %v704 = vunpack.c.0.s8 %v703
          %v705 = vlaneseq
          %v706 = vshrl.u32 %v705, 7
          %v707 = vsub.s32 %v704, %v706
          %v708 = vrot.slane %v700, %v707
          %v710 = vunpack.c.l.s4 1934713408
          %v711 = vunpack.c.0.s8 %v710
          %v712 = vlaneseq
          %v713 = vshrl.u32 %v712, 7
          %v714 = vsub.s32 %v711, %v713
          %v715 = vrot.slane %v701, %v714
          %v716 = vcombine.low %v660, %v676
          %v717 = vcombine.high %v660, %v676
          %v719 = vunpack.c.l.s4 1934713408
          %v720 = vunpack.c.0.s8 %v719
          %v721 = vlaneseq
          %v722 = vshrl.u32 %v721, 7
          %v723 = vsub.s32 %v720, %v722
          %v724 = vrot.slane %v716, %v723
          %v726 = vunpack.c.l.s4 1934713408
          %v727 = vunpack.c.0.s8 %v726
          %v728 = vlaneseq
          %v729 = vshrl.u32 %v728, 7
          %v730 = vsub.s32 %v727, %v729
          %v731 = vrot.slane %v717, %v730
          %v732 = vcombine.low %v667, %v683
          %v733 = vcombine.high %v667, %v683
          %v735 = vunpack.c.l.s4 1934713408
          %v736 = vunpack.c.0.s8 %v735
          %v737 = vlaneseq
          %v738 = vshrl.u32 %v737, 7
          %v739 = vsub.s32 %v736, %v738
          %v740 = vrot.slane %v732, %v739
          %v742 = vunpack.c.l.s4 1934713408
          %v743 = vunpack.c.0.s8 %v742
          %v744 = vlaneseq
          %v745 = vshrl.u32 %v744, 7
          %v746 = vsub.s32 %v743, %v745
          %v747 = vrot.slane %v733, %v746
          %v748 = vcombine.low %v692, %v724
          %v749 = vcombine.high %v692, %v724
          %v750 = vcombine.low %v699, %v731
          %v751 = vcombine.high %v699, %v731
          %v752 = vcombine.low %v708, %v740
          %v753 = vcombine.high %v708, %v740
          %v754 = vcombine.low %v715, %v747
          %v755 = vcombine.high %v715, %v747
          %v756 = vcombine.low %v318, %v340
          %v757 = vcombine.high %v318, %v340
          %v759 = vunpack.c.l.s4 1983009808
          %v760 = vunpack.c.0.s8 %v759
          %v761 = vlaneseq
          %v762 = vshrl.u32 %v761, 7
          %v763 = vsub.s32 %v760, %v762
          %v764 = vrot.slane %v756, %v763
          %v766 = vunpack.c.l.s4 1983009808
          %v767 = vunpack.c.0.s8 %v766
          %v768 = vlaneseq
          %v769 = vshrl.u32 %v768, 7
          %v770 = vsub.s32 %v767, %v769
          %v771 = vrot.slane %v757, %v770
          %v772 = vcombine.low %v329, %v351
          %v773 = vcombine.high %v329, %v351
          %v775 = vunpack.c.l.s4 1983009808
          %v776 = vunpack.c.0.s8 %v775
          %v777 = vlaneseq
          %v778 = vshrl.u32 %v777, 7
          %v779 = vsub.s32 %v776, %v778
          %v780 = vrot.slane %v772, %v779
          %v782 = vunpack.c.l.s4 1983009808
          %v783 = vunpack.c.0.s8 %v782
          %v784 = vlaneseq
          %v785 = vshrl.u32 %v784, 7
          %v786 = vsub.s32 %v783, %v785
          %v787 = vrot.slane %v773, %v786
          %v788 = vcombine.low %v362, %v384
          %v789 = vcombine.high %v362, %v384
          %v791 = vunpack.c.l.s4 1983009808
          %v792 = vunpack.c.0.s8 %v791
          %v793 = vlaneseq
          %v794 = vshrl.u32 %v793, 7
          %v795 = vsub.s32 %v792, %v794
          %v796 = vrot.slane %v788, %v795
          %v798 = vunpack.c.l.s4 1983009808
          %v799 = vunpack.c.0.s8 %v798
          %v800 = vlaneseq
          %v801 = vshrl.u32 %v800, 7
          %v802 = vsub.s32 %v799, %v801
          %v803 = vrot.slane %v789, %v802
          %v804 = vcombine.low %v373, %v395
          %v805 = vcombine.high %v373, %v395
          %v807 = vunpack.c.l.s4 1983009808
          %v808 = vunpack.c.0.s8 %v807
          %v809 = vlaneseq
          %v810 = vshrl.u32 %v809, 7
          %v811 = vsub.s32 %v808, %v810
          %v812 = vrot.slane %v804, %v811
          %v814 = vunpack.c.l.s4 1983009808
          %v815 = vunpack.c.0.s8 %v814
          %v816 = vlaneseq
          %v817 = vshrl.u32 %v816, 7
          %v818 = vsub.s32 %v815, %v817
          %v819 = vrot.slane %v805, %v818
          %v820 = vcombine.low %v764, %v780
          %v821 = vcombine.high %v764, %v780
          %v823 = vunpack.c.l.s4 1934713408
          %v824 = vunpack.c.0.s8 %v823
          %v825 = vlaneseq
          %v826 = vshrl.u32 %v825, 7
          %v827 = vsub.s32 %v824, %v826
          %v828 = vrot.slane %v820, %v827
          %v830 = vunpack.c.l.s4 1934713408
          %v831 = vunpack.c.0.s8 %v830
          %v832 = vlaneseq
          %v833 = vshrl.u32 %v832, 7
          %v834 = vsub.s32 %v831, %v833
          %v835 = vrot.slane %v821, %v834
          %v836 = vcombine.low %v771, %v787
          %v837 = vcombine.high %v771, %v787
          %v839 = vunpack.c.l.s4 1934713408
          %v840 = vunpack.c.0.s8 %v839
          %v841 = vlaneseq
          %v842 = vshrl.u32 %v841, 7
          %v843 = vsub.s32 %v840, %v842
          %v844 = vrot.slane %v836, %v843
          %v846 = vunpack.c.l.s4 1934713408
          %v847 = vunpack.c.0.s8 %v846
          %v848 = vlaneseq
          %v849 = vshrl.u32 %v848, 7
          %v850 = vsub.s32 %v847, %v849
          %v851 = vrot.slane %v837, %v850
          %v852 = vcombine.low %v796, %v812
          %v853 = vcombine.high %v796, %v812
          %v855 = vunpack.c.l.s4 1934713408
          %v856 = vunpack.c.0.s8 %v855
          %v857 = vlaneseq
          %v858 = vshrl.u32 %v857, 7
          %v859 = vsub.s32 %v856, %v858
          %v860 = vrot.slane %v852, %v859
          %v862 = vunpack.c.l.s4 1934713408
          %v863 = vunpack.c.0.s8 %v862
          %v864 = vlaneseq
          %v865 = vshrl.u32 %v864, 7
          %v866 = vsub.s32 %v863, %v865
          %v867 = vrot.slane %v853, %v866
          %v868 = vcombine.low %v803, %v819
          %v869 = vcombine.high %v803, %v819
          %v871 = vunpack.c.l.s4 1934713408
          %v872 = vunpack.c.0.s8 %v871
          %v873 = vlaneseq
          %v874 = vshrl.u32 %v873, 7
          %v875 = vsub.s32 %v872, %v874
          %v876 = vrot.slane %v868, %v875
          %v878 = vunpack.c.l.s4 1934713408
          %v879 = vunpack.c.0.s8 %v878
          %v880 = vlaneseq
          %v881 = vshrl.u32 %v880, 7
          %v882 = vsub.s32 %v879, %v881
          %v883 = vrot.slane %v869, %v882
          %v884 = vcombine.low %v828, %v860
          %v885 = vcombine.high %v828, %v860
          %v886 = vcombine.low %v835, %v867
          %v887 = vcombine.high %v835, %v867
          %v888 = vcombine.low %v844, %v876
          %v889 = vcombine.high %v844, %v876
          %v890 = vcombine.low %v851, %v883
          %v891 = vcombine.high %v851, %v883
          %v892 = vcombine.low %v406, %v428
          %v893 = vcombine.high %v406, %v428
          %v895 = vunpack.c.l.s4 1983009808
          %v896 = vunpack.c.0.s8 %v895
          %v897 = vlaneseq
          %v898 = vshrl.u32 %v897, 7
          %v899 = vsub.s32 %v896, %v898
          %v900 = vrot.slane %v892, %v899
          %v902 = vunpack.c.l.s4 1983009808
          %v903 = vunpack.c.0.s8 %v902
          %v904 = vlaneseq
          %v905 = vshrl.u32 %v904, 7
          %v906 = vsub.s32 %v903, %v905
          %v907 = vrot.slane %v893, %v906
          %v908 = vcombine.low %v417, %v439
          %v909 = vcombine.high %v417, %v439
          %v911 = vunpack.c.l.s4 1983009808
          %v912 = vunpack.c.0.s8 %v911
          %v913 = vlaneseq
          %v914 = vshrl.u32 %v913, 7
          %v915 = vsub.s32 %v912, %v914
          %v916 = vrot.slane %v908, %v915
          %v918 = vunpack.c.l.s4 1983009808
          %v919 = vunpack.c.0.s8 %v918
          %v920 = vlaneseq
          %v921 = vshrl.u32 %v920, 7
          %v922 = vsub.s32 %v919, %v921
          %v923 = vrot.slane %v909, %v922
          %v924 = vcombine.low %v450, %v472
          %v925 = vcombine.high %v450, %v472
          %v927 = vunpack.c.l.s4 1983009808
          %v928 = vunpack.c.0.s8 %v927
          %v929 = vlaneseq
          %v930 = vshrl.u32 %v929, 7
          %v931 = vsub.s32 %v928, %v930
          %v932 = vrot.slane %v924, %v931
          %v934 = vunpack.c.l.s4 1983009808
          %v935 = vunpack.c.0.s8 %v934
          %v936 = vlaneseq
          %v937 = vshrl.u32 %v936, 7
          %v938 = vsub.s32 %v935, %v937
          %v939 = vrot.slane %v925, %v938
          %v940 = vcombine.low %v461, %v483
          %v941 = vcombine.high %v461, %v483
          %v943 = vunpack.c.l.s4 1983009808
          %v944 = vunpack.c.0.s8 %v943
          %v945 = vlaneseq
          %v946 = vshrl.u32 %v945, 7
          %v947 = vsub.s32 %v944, %v946
          %v948 = vrot.slane %v940, %v947
          %v950 = vunpack.c.l.s4 1983009808
          %v951 = vunpack.c.0.s8 %v950
          %v952 = vlaneseq
          %v953 = vshrl.u32 %v952, 7
          %v954 = vsub.s32 %v951, %v953
          %v955 = vrot.slane %v941, %v954
          %v956 = vcombine.low %v900, %v916
          %v957 = vcombine.high %v900, %v916
          %v959 = vunpack.c.l.s4 1934713408
          %v960 = vunpack.c.0.s8 %v959
          %v961 = vlaneseq
          %v962 = vshrl.u32 %v961, 7
          %v963 = vsub.s32 %v960, %v962
          %v964 = vrot.slane %v956, %v963
          %v966 = vunpack.c.l.s4 1934713408
          %v967 = vunpack.c.0.s8 %v966
          %v968 = vlaneseq
          %v969 = vshrl.u32 %v968, 7
          %v970 = vsub.s32 %v967, %v969
          %v971 = vrot.slane %v957, %v970
          %v972 = vcombine.low %v907, %v923
          %v973 = vcombine.high %v907, %v923
          %v975 = vunpack.c.l.s4 1934713408
          %v976 = vunpack.c.0.s8 %v975
          %v977 = vlaneseq
          %v978 = vshrl.u32 %v977, 7
          %v979 = vsub.s32 %v976, %v978
          %v980 = vrot.slane %v972, %v979
          %v982 = vunpack.c.l.s4 1934713408
          %v983 = vunpack.c.0.s8 %v982
          %v984 = vlaneseq
          %v985 = vshrl.u32 %v984, 7
          %v986 = vsub.s32 %v983, %v985
          %v987 = vrot.slane %v973, %v986
          %v988 = vcombine.low %v932, %v948
          %v989 = vcombine.high %v932, %v948
          %v991 = vunpack.c.l.s4 1934713408
          %v992 = vunpack.c.0.s8 %v991
          %v993 = vlaneseq
          %v994 = vshrl.u32 %v993, 7
          %v995 = vsub.s32 %v992, %v994
          %v996 = vrot.slane %v988, %v995
          %v998 = vunpack.c.l.s4 1934713408
          %v999 = vunpack.c.0.s8 %v998
          %v1000 = vlaneseq
          %v1001 = vshrl.u32 %v1000, 7
          %v1002 = vsub.s32 %v999, %v1001
          %v1003 = vrot.slane %v989, %v1002
          %v1004 = vcombine.low %v939, %v955
          %v1005 = vcombine.high %v939, %v955
          %v1007 = vunpack.c.l.s4 1934713408
          %v1008 = vunpack.c.0.s8 %v1007
          %v1009 = vlaneseq
          %v1010 = vshrl.u32 %v1009, 7
          %v1011 = vsub.s32 %v1008, %v1010
          %v1012 = vrot.slane %v1004, %v1011
          %v1014 = vunpack.c.l.s4 1934713408
          %v1015 = vunpack.c.0.s8 %v1014
          %v1016 = vlaneseq
          %v1017 = vshrl.u32 %v1016, 7
          %v1018 = vsub.s32 %v1015, %v1017
          %v1019 = vrot.slane %v1005, %v1018
          %v1020 = vcombine.low %v964, %v996
          %v1021 = vcombine.high %v964, %v996
          %v1022 = vcombine.low %v971, %v1003
          %v1023 = vcombine.high %v971, %v1003
          %v1024 = vcombine.low %v980, %v1012
          %v1025 = vcombine.high %v980, %v1012
          %v1026 = vcombine.low %v987, %v1019
          %v1027 = vcombine.high %v987, %v1019
          %1030 = vrot.lane.b32.xlu0 %v613, 2
          %v1031 = vpop.permute.xlu0 %1030
          %1032 = vrot.lane.b32.xlu0 %v749, 2
          %v1033 = vpop.permute.xlu0 %1032
          %1038 = vrot.lane.b32.xlu0 %v614, 4
          %v1039 = vpop.permute.xlu0 %1038
          %1040 = vrot.lane.b32.xlu0 %v750, 4
          %v1041 = vpop.permute.xlu0 %1040
          %1046 = vrot.lane.b32.xlu0 %v615, 6
          %v1047 = vpop.permute.xlu0 %1046
          %1048 = vrot.lane.b32.xlu0 %v751, 6
          %v1049 = vpop.permute.xlu0 %1048
          %1054 = vrot.lane.b32.xlu0 %v616, 8
          %v1055 = vpop.permute.xlu0 %1054
          %1056 = vrot.lane.b32.xlu0 %v752, 8
          %v1057 = vpop.permute.xlu0 %1056
          %1062 = vrot.lane.b32.xlu0 %v617, 10
          %v1063 = vpop.permute.xlu0 %1062
          %1064 = vrot.lane.b32.xlu0 %v753, 10
          %v1065 = vpop.permute.xlu0 %1064
          %1070 = vrot.lane.b32.xlu0 %v618, 12
          %v1071 = vpop.permute.xlu0 %1070
          %1072 = vrot.lane.b32.xlu0 %v754, 12
          %v1073 = vpop.permute.xlu0 %1072
          %1078 = vrot.lane.b32.xlu0 %v619, 14
          %v1079 = vpop.permute.xlu0 %1078
          %1080 = vrot.lane.b32.xlu0 %v755, 14
          %v1081 = vpop.permute.xlu0 %1080
          %1086 = vrot.lane.b32.xlu0 %v884, 16
          %v1087 = vpop.permute.xlu0 %1086
          %1088 = vrot.lane.b32.xlu0 %v1020, 16
          %v1089 = vpop.permute.xlu0 %1088
          %1094 = vrot.lane.b32.xlu0 %v885, 18
          %v1095 = vpop.permute.xlu0 %1094
          %1096 = vrot.lane.b32.xlu0 %v1021, 18
          %v1097 = vpop.permute.xlu0 %1096
          %1102 = vrot.lane.b32.xlu0 %v886, 20
          %v1103 = vpop.permute.xlu0 %1102
          %1104 = vrot.lane.b32.xlu0 %v1022, 20
          %v1105 = vpop.permute.xlu0 %1104
          %1110 = vrot.lane.b32.xlu0 %v887, 22
          %v1111 = vpop.permute.xlu0 %1110
          %1112 = vrot.lane.b32.xlu0 %v1023, 22
          %v1113 = vpop.permute.xlu0 %1112
          %1118 = vrot.lane.b32.xlu0 %v888, 24
          %v1119 = vpop.permute.xlu0 %1118
          %1120 = vrot.lane.b32.xlu0 %v1024, 24
          %v1121 = vpop.permute.xlu0 %1120
          %1126 = vrot.lane.b32.xlu0 %v889, 26
          %v1127 = vpop.permute.xlu0 %1126
          %1128 = vrot.lane.b32.xlu0 %v1025, 26
          %v1129 = vpop.permute.xlu0 %1128
          %1134 = vrot.lane.b32.xlu0 %v890, 28
          %v1135 = vpop.permute.xlu0 %1134
          %1136 = vrot.lane.b32.xlu0 %v1026, 28
          %v1137 = vpop.permute.xlu0 %1136
          %1142 = vrot.lane.b32.xlu0 %v891, 30
          %v1143 = vpop.permute.xlu0 %1142
          %1144 = vrot.lane.b32.xlu0 %v1027, 30
          %v1145 = vpop.permute.xlu0 %1144
          %vm1148 = vcmask 15360
          %v1149 = vsel %vm1148, %v612, %v1031
          %v1150 = vsel %vm1148, %v748, %v1033
          %vm1151 = vcmask 31744
          %v1152 = vsel %vm1151, %v1149, %v1039
          %v1153 = vsel %vm1151, %v1150, %v1041
          %vm1154 = vcmask 48128
          %v1155 = vsel %vm1154, %v1152, %v1047
          %v1156 = vsel %vm1154, %v1153, %v1049
          %vm1157 = vcmask 64512
          %v1158 = vsel %vm1157, %v1155, %v1055
          %v1159 = vsel %vm1157, %v1156, %v1057
          %vm1160 = vcmask 80896
          %v1161 = vsel %vm1160, %v1158, %v1063
          %v1162 = vsel %vm1160, %v1159, %v1065
          %vm1163 = vcmask 97280
          %v1164 = vsel %vm1163, %v1161, %v1071
          %v1165 = vsel %vm1163, %v1162, %v1073
          %vm1166 = vcmask 113664
          %v1167 = vsel %vm1166, %v1164, %v1079
          %v1168 = vsel %vm1166, %v1165, %v1081
          %v1169 = vsel %vm266, %v1167, %v1087
          %v1170 = vsel %vm266, %v1168, %v1089
          %vm1171 = vcmask 146432
          %v1172 = vsel %vm1171, %v1169, %v1095
          %v1173 = vsel %vm1171, %v1170, %v1097
          %vm1174 = vcmask 162816
          %v1175 = vsel %vm1174, %v1172, %v1103
          %v1176 = vsel %vm1174, %v1173, %v1105
          %vm1177 = vcmask 179200
          %v1178 = vsel %vm1177, %v1175, %v1111
          %v1179 = vsel %vm1177, %v1176, %v1113
          %vm1180 = vcmask 195584
          %v1181 = vsel %vm1180, %v1178, %v1119
          %v1182 = vsel %vm1180, %v1179, %v1121
          %vm1183 = vcmask 211968
          %v1184 = vsel %vm1183, %v1181, %v1127
          %v1185 = vsel %vm1183, %v1182, %v1129
          %vm1186 = vcmask 228352
          %v1187 = vsel %vm1186, %v1184, %v1135
          %v1188 = vsel %vm1186, %v1185, %v1137
          %vm1189 = vcmask 244736
          %v1190 = vsel %vm1189, %v1187, %v1143
          %v1191 = vsel %vm1189, %v1188, %v1145
          %1194 = vrot.lane.b32.xlu0 %v1190, 32
          %v1195 = vpop.permute.xlu0 %1194
          %1196 = vrot.lane.b32.xlu0 %v1191, 32
          %v1197 = vpop.permute.xlu0 %1196
          %vm1200 = vcmask 261120
          %v1201 = vsel %vm1200, %v1190, %v1195
          %v1202 = vsel %vm1200, %v1191, %v1197
          %vm1203 = vcmask 523264
          %1204 = vst.msk [vmem:[%s248] sm:$0xff] %vm1203, %v1201
          %1205 = vst.msk [vmem:[%s248 + $0x8] sm:$0xff] %vm1203, %v1202
          %s1206 = sadd.s32 %s261, 1
          %s1207 = scalar_lea.vmem %s214, 16 [#allocation5]
          %v1208 = vld [vmem:[%s1207] sm:$0xff]
          %v1209 = vld [vmem:[%s1207 + $0x8] sm:$0xff]
          %s1210 = sld [smem:[#allocation3 + %s1206]]
          %s1211 = sld [smem:[#allocation4 + %s1206]]
          %v1212 = vsel %vm266, %v1208, 0.0
          %1213 = vadd.xlane.f32.xlu0 %v1212
          %v1214 = vpop.xlane.xlu0 %1213
          %v1215 = vsel %vm266, %v1209, 0.0
          %1216 = vadd.xlane.f32.xlu0 %v1215
          %v1217 = vpop.xlane.xlu0 %1216
          %v1218 = vadd.f32 %v1214, %v1217
          %v1219 = vrot.slane %v1218, 4
          %v1220 = vadd.f32 %v1218, %v1219
          %v1221 = vrot.slane %v1220, 2
          %v1222 = vadd.f32 %v1220, %v1221
          %v1223 = vrot.slane %v1222, 1
          %v1224 = vadd.f32 %v1222, %v1223
          %v1225 = vmul.f32 %v1224, 0.00390625
          %v1226 = vsub.f32 %v1208, %v1225
          %v1227 = vsub.f32 %v1209, %v1225
          %v1228 = vmul.f32 %v1226, %v1226
          %v1229 = vmul.f32 %v1227, %v1227
          %v1230 = vsel %vm266, %v1228, 0.0
          %1231 = vadd.xlane.f32.xlu0 %v1230
          %v1232 = vpop.xlane.xlu0 %1231
          %v1233 = vsel %vm266, %v1229, 0.0
          %1234 = vadd.xlane.f32.xlu0 %v1233
          %v1235 = vpop.xlane.xlu0 %1234
          %v1236 = vadd.f32 %v1232, %v1235
          %v1237 = vrot.slane %v1236, 4
          %v1238 = vadd.f32 %v1236, %v1237
          %v1239 = vrot.slane %v1238, 2
          %v1240 = vadd.f32 %v1238, %v1239
          %v1241 = vrot.slane %v1240, 1
          %v1242 = vadd.f32 %v1240, %v1241
          %v1243 = vmul.f32 %v1242, 0.00390625
          %v1244 = vadd.f32 %v1243, 1e-05
          %v1245 = vrsqrt.pop %v1244
          %v1246 = vstv %s1210
          %v1247 = vmul.f32 %v1245, %v1246
          %v1248 = vmul.f32 %v1226, %v1247
          %v1249 = vmul.f32 %v1227, %v1247
          %v1250 = vstv %s1211
          %v1251 = vadd.f32 %v1248, %v1250
          %v1252 = vadd.f32 %v1249, %v1250
          %v1253 = vlaneseq
          %v1254 = vshrl.u32 %v1253, 7
          %v1255 = vsub.s32 0, %v1254
          %v1256 = vrot.slane %v1251, %v1255
          %1258 = vbcast.lane.b32.xlu0 %v1256, 256
          %v1259 = vpop.permute.xlu0 %1258
          %s1261 = sor.u32 256, 8
          %1262 = vbcast.lane.b32.xlu0 %v1256, %s1261
          %v1263 = vpop.permute.xlu0 %1262
          %v1264 = vlaneseq
          %v1265 = vshrl.u32 %v1264, 7
          %v1266 = vsub.s32 1, %v1265
          %v1267 = vrot.slane %v1251, %v1266
          %1269 = vbcast.lane.b32.xlu0 %v1267, 256
          %v1270 = vpop.permute.xlu0 %1269
          %s1272 = sor.u32 256, 8
          %1273 = vbcast.lane.b32.xlu0 %v1267, %s1272
          %v1274 = vpop.permute.xlu0 %1273
          %v1275 = vlaneseq
          %v1276 = vshrl.u32 %v1275, 7
          %v1277 = vsub.s32 2, %v1276
          %v1278 = vrot.slane %v1251, %v1277
          %1280 = vbcast.lane.b32.xlu0 %v1278, 256
          %v1281 = vpop.permute.xlu0 %1280
          %s1283 = sor.u32 256, 8
          %1284 = vbcast.lane.b32.xlu0 %v1278, %s1283
          %v1285 = vpop.permute.xlu0 %1284
          %v1286 = vlaneseq
          %v1287 = vshrl.u32 %v1286, 7
          %v1288 = vsub.s32 3, %v1287
          %v1289 = vrot.slane %v1251, %v1288
          %1291 = vbcast.lane.b32.xlu0 %v1289, 256
          %v1292 = vpop.permute.xlu0 %1291
          %s1294 = sor.u32 256, 8
          %1295 = vbcast.lane.b32.xlu0 %v1289, %s1294
          %v1296 = vpop.permute.xlu0 %1295
          %v1297 = vlaneseq
          %v1298 = vshrl.u32 %v1297, 7
          %v1299 = vsub.s32 4, %v1298
          %v1300 = vrot.slane %v1251, %v1299
          %1302 = vbcast.lane.b32.xlu0 %v1300, 256
          %v1303 = vpop.permute.xlu0 %1302
          %s1305 = sor.u32 256, 8
          %1306 = vbcast.lane.b32.xlu0 %v1300, %s1305
          %v1307 = vpop.permute.xlu0 %1306
          %v1308 = vlaneseq
          %v1309 = vshrl.u32 %v1308, 7
          %v1310 = vsub.s32 5, %v1309
          %v1311 = vrot.slane %v1251, %v1310
          %1313 = vbcast.lane.b32.xlu0 %v1311, 256
          %v1314 = vpop.permute.xlu0 %1313
          %s1316 = sor.u32 256, 8
          %1317 = vbcast.lane.b32.xlu0 %v1311, %s1316
          %v1318 = vpop.permute.xlu0 %1317
          %v1319 = vlaneseq
          %v1320 = vshrl.u32 %v1319, 7
          %v1321 = vsub.s32 6, %v1320
          %v1322 = vrot.slane %v1251, %v1321
          %1324 = vbcast.lane.b32.xlu0 %v1322, 256
          %v1325 = vpop.permute.xlu0 %1324
          %s1327 = sor.u32 256, 8
          %1328 = vbcast.lane.b32.xlu0 %v1322, %s1327
          %v1329 = vpop.permute.xlu0 %1328
          %v1330 = vlaneseq
          %v1331 = vshrl.u32 %v1330, 7
          %v1332 = vsub.s32 7, %v1331
          %v1333 = vrot.slane %v1251, %v1332
          %1335 = vbcast.lane.b32.xlu0 %v1333, 256
          %v1336 = vpop.permute.xlu0 %1335
          %s1338 = sor.u32 256, 8
          %1339 = vbcast.lane.b32.xlu0 %v1333, %s1338
          %v1340 = vpop.permute.xlu0 %1339
          %v1341 = vlaneseq
          %v1342 = vshrl.u32 %v1341, 7
          %v1343 = vsub.s32 0, %v1342
          %v1344 = vrot.slane %v1252, %v1343
          %1346 = vbcast.lane.b32.xlu0 %v1344, 256
          %v1347 = vpop.permute.xlu0 %1346
          %s1349 = sor.u32 256, 8
          %1350 = vbcast.lane.b32.xlu0 %v1344, %s1349
          %v1351 = vpop.permute.xlu0 %1350
          %v1352 = vlaneseq
          %v1353 = vshrl.u32 %v1352, 7
          %v1354 = vsub.s32 1, %v1353
          %v1355 = vrot.slane %v1252, %v1354
          %1357 = vbcast.lane.b32.xlu0 %v1355, 256
          %v1358 = vpop.permute.xlu0 %1357
          %s1360 = sor.u32 256, 8
          %1361 = vbcast.lane.b32.xlu0 %v1355, %s1360
          %v1362 = vpop.permute.xlu0 %1361
          %v1363 = vlaneseq
          %v1364 = vshrl.u32 %v1363, 7
          %v1365 = vsub.s32 2, %v1364
          %v1366 = vrot.slane %v1252, %v1365
          %1368 = vbcast.lane.b32.xlu0 %v1366, 256
          %v1369 = vpop.permute.xlu0 %1368
          %s1371 = sor.u32 256, 8
          %1372 = vbcast.lane.b32.xlu0 %v1366, %s1371
          %v1373 = vpop.permute.xlu0 %1372
          %v1374 = vlaneseq
          %v1375 = vshrl.u32 %v1374, 7
          %v1376 = vsub.s32 3, %v1375
          %v1377 = vrot.slane %v1252, %v1376
          %1379 = vbcast.lane.b32.xlu0 %v1377, 256
          %v1380 = vpop.permute.xlu0 %1379
          %s1382 = sor.u32 256, 8
          %1383 = vbcast.lane.b32.xlu0 %v1377, %s1382
          %v1384 = vpop.permute.xlu0 %1383
          %v1385 = vlaneseq
          %v1386 = vshrl.u32 %v1385, 7
          %v1387 = vsub.s32 4, %v1386
          %v1388 = vrot.slane %v1252, %v1387
          %1390 = vbcast.lane.b32.xlu0 %v1388, 256
          %v1391 = vpop.permute.xlu0 %1390
          %s1393 = sor.u32 256, 8
          %1394 = vbcast.lane.b32.xlu0 %v1388, %s1393
          %v1395 = vpop.permute.xlu0 %1394
          %v1396 = vlaneseq
          %v1397 = vshrl.u32 %v1396, 7
          %v1398 = vsub.s32 5, %v1397
          %v1399 = vrot.slane %v1252, %v1398
          %1401 = vbcast.lane.b32.xlu0 %v1399, 256
          %v1402 = vpop.permute.xlu0 %1401
          %s1404 = sor.u32 256, 8
          %1405 = vbcast.lane.b32.xlu0 %v1399, %s1404
          %v1406 = vpop.permute.xlu0 %1405
          %v1407 = vlaneseq
          %v1408 = vshrl.u32 %v1407, 7
          %v1409 = vsub.s32 6, %v1408
          %v1410 = vrot.slane %v1252, %v1409
          %1412 = vbcast.lane.b32.xlu0 %v1410, 256
          %v1413 = vpop.permute.xlu0 %1412
          %s1415 = sor.u32 256, 8
          %1416 = vbcast.lane.b32.xlu0 %v1410, %s1415
          %v1417 = vpop.permute.xlu0 %1416
          %v1418 = vlaneseq
          %v1419 = vshrl.u32 %v1418, 7
          %v1420 = vsub.s32 7, %v1419
          %v1421 = vrot.slane %v1252, %v1420
          %1423 = vbcast.lane.b32.xlu0 %v1421, 256
          %v1424 = vpop.permute.xlu0 %1423
          %s1426 = sor.u32 256, 8
          %1427 = vbcast.lane.b32.xlu0 %v1421, %s1426
          %v1428 = vpop.permute.xlu0 %1427
          %v1429 = vcombine.low %v1259, %v1281
          %v1430 = vcombine.high %v1259, %v1281
          %v1432 = vunpack.c.l.s4 1983009808
          %v1433 = vunpack.c.0.s8 %v1432
          %v1434 = vlaneseq
          %v1435 = vshrl.u32 %v1434, 7
          %v1436 = vsub.s32 %v1433, %v1435
          %v1437 = vrot.slane %v1429, %v1436
          %v1439 = vunpack.c.l.s4 1983009808
          %v1440 = vunpack.c.0.s8 %v1439
          %v1441 = vlaneseq
          %v1442 = vshrl.u32 %v1441, 7
          %v1443 = vsub.s32 %v1440, %v1442
          %v1444 = vrot.slane %v1430, %v1443
          %v1445 = vcombine.low %v1270, %v1292
          %v1446 = vcombine.high %v1270, %v1292
          %v1448 = vunpack.c.l.s4 1983009808
          %v1449 = vunpack.c.0.s8 %v1448
          %v1450 = vlaneseq
          %v1451 = vshrl.u32 %v1450, 7
          %v1452 = vsub.s32 %v1449, %v1451
          %v1453 = vrot.slane %v1445, %v1452
          %v1455 = vunpack.c.l.s4 1983009808
          %v1456 = vunpack.c.0.s8 %v1455
          %v1457 = vlaneseq
          %v1458 = vshrl.u32 %v1457, 7
          %v1459 = vsub.s32 %v1456, %v1458
          %v1460 = vrot.slane %v1446, %v1459
          %v1461 = vcombine.low %v1303, %v1325
          %v1462 = vcombine.high %v1303, %v1325
          %v1464 = vunpack.c.l.s4 1983009808
          %v1465 = vunpack.c.0.s8 %v1464
          %v1466 = vlaneseq
          %v1467 = vshrl.u32 %v1466, 7
          %v1468 = vsub.s32 %v1465, %v1467
          %v1469 = vrot.slane %v1461, %v1468
          %v1471 = vunpack.c.l.s4 1983009808
          %v1472 = vunpack.c.0.s8 %v1471
          %v1473 = vlaneseq
          %v1474 = vshrl.u32 %v1473, 7
          %v1475 = vsub.s32 %v1472, %v1474
          %v1476 = vrot.slane %v1462, %v1475
          %v1477 = vcombine.low %v1314, %v1336
          %v1478 = vcombine.high %v1314, %v1336
          %v1480 = vunpack.c.l.s4 1983009808
          %v1481 = vunpack.c.0.s8 %v1480
          %v1482 = vlaneseq
          %v1483 = vshrl.u32 %v1482, 7
          %v1484 = vsub.s32 %v1481, %v1483
          %v1485 = vrot.slane %v1477, %v1484
          %v1487 = vunpack.c.l.s4 1983009808
          %v1488 = vunpack.c.0.s8 %v1487
          %v1489 = vlaneseq
          %v1490 = vshrl.u32 %v1489, 7
          %v1491 = vsub.s32 %v1488, %v1490
          %v1492 = vrot.slane %v1478, %v1491
          %v1493 = vcombine.low %v1437, %v1453
          %v1494 = vcombine.high %v1437, %v1453
          %v1496 = vunpack.c.l.s4 1934713408
          %v1497 = vunpack.c.0.s8 %v1496
          %v1498 = vlaneseq
          %v1499 = vshrl.u32 %v1498, 7
          %v1500 = vsub.s32 %v1497, %v1499
          %v1501 = vrot.slane %v1493, %v1500
          %v1503 = vunpack.c.l.s4 1934713408
          %v1504 = vunpack.c.0.s8 %v1503
          %v1505 = vlaneseq
          %v1506 = vshrl.u32 %v1505, 7
          %v1507 = vsub.s32 %v1504, %v1506
          %v1508 = vrot.slane %v1494, %v1507
          %v1509 = vcombine.low %v1444, %v1460
          %v1510 = vcombine.high %v1444, %v1460
          %v1512 = vunpack.c.l.s4 1934713408
          %v1513 = vunpack.c.0.s8 %v1512
          %v1514 = vlaneseq
          %v1515 = vshrl.u32 %v1514, 7
          %v1516 = vsub.s32 %v1513, %v1515
          %v1517 = vrot.slane %v1509, %v1516
          %v1519 = vunpack.c.l.s4 1934713408
          %v1520 = vunpack.c.0.s8 %v1519
          %v1521 = vlaneseq
          %v1522 = vshrl.u32 %v1521, 7
          %v1523 = vsub.s32 %v1520, %v1522
          %v1524 = vrot.slane %v1510, %v1523
          %v1525 = vcombine.low %v1469, %v1485
          %v1526 = vcombine.high %v1469, %v1485
          %v1528 = vunpack.c.l.s4 1934713408
          %v1529 = vunpack.c.0.s8 %v1528
          %v1530 = vlaneseq
          %v1531 = vshrl.u32 %v1530, 7
          %v1532 = vsub.s32 %v1529, %v1531
          %v1533 = vrot.slane %v1525, %v1532
          %v1535 = vunpack.c.l.s4 1934713408
          %v1536 = vunpack.c.0.s8 %v1535
          %v1537 = vlaneseq
          %v1538 = vshrl.u32 %v1537, 7
          %v1539 = vsub.s32 %v1536, %v1538
          %v1540 = vrot.slane %v1526, %v1539
          %v1541 = vcombine.low %v1476, %v1492
          %v1542 = vcombine.high %v1476, %v1492
          %v1544 = vunpack.c.l.s4 1934713408
          %v1545 = vunpack.c.0.s8 %v1544
          %v1546 = vlaneseq
          %v1547 = vshrl.u32 %v1546, 7
          %v1548 = vsub.s32 %v1545, %v1547
          %v1549 = vrot.slane %v1541, %v1548
          %v1551 = vunpack.c.l.s4 1934713408
          %v1552 = vunpack.c.0.s8 %v1551
          %v1553 = vlaneseq
          %v1554 = vshrl.u32 %v1553, 7
          %v1555 = vsub.s32 %v1552, %v1554
          %v1556 = vrot.slane %v1542, %v1555
          %v1557 = vcombine.low %v1501, %v1533
          %v1558 = vcombine.high %v1501, %v1533
          %v1559 = vcombine.low %v1508, %v1540
          %v1560 = vcombine.high %v1508, %v1540
          %v1561 = vcombine.low %v1517, %v1549
          %v1562 = vcombine.high %v1517, %v1549
          %v1563 = vcombine.low %v1524, %v1556
          %v1564 = vcombine.high %v1524, %v1556
          %v1565 = vcombine.low %v1347, %v1369
          %v1566 = vcombine.high %v1347, %v1369
          %v1568 = vunpack.c.l.s4 1983009808
          %v1569 = vunpack.c.0.s8 %v1568
          %v1570 = vlaneseq
          %v1571 = vshrl.u32 %v1570, 7
          %v1572 = vsub.s32 %v1569, %v1571
          %v1573 = vrot.slane %v1565, %v1572
          %v1575 = vunpack.c.l.s4 1983009808
          %v1576 = vunpack.c.0.s8 %v1575
          %v1577 = vlaneseq
          %v1578 = vshrl.u32 %v1577, 7
          %v1579 = vsub.s32 %v1576, %v1578
          %v1580 = vrot.slane %v1566, %v1579
          %v1581 = vcombine.low %v1358, %v1380
          %v1582 = vcombine.high %v1358, %v1380
          %v1584 = vunpack.c.l.s4 1983009808
          %v1585 = vunpack.c.0.s8 %v1584
          %v1586 = vlaneseq
          %v1587 = vshrl.u32 %v1586, 7
          %v1588 = vsub.s32 %v1585, %v1587
          %v1589 = vrot.slane %v1581, %v1588
          %v1591 = vunpack.c.l.s4 1983009808
          %v1592 = vunpack.c.0.s8 %v1591
          %v1593 = vlaneseq
          %v1594 = vshrl.u32 %v1593, 7
          %v1595 = vsub.s32 %v1592, %v1594
          %v1596 = vrot.slane %v1582, %v1595
          %v1597 = vcombine.low %v1391, %v1413
          %v1598 = vcombine.high %v1391, %v1413
          %v1600 = vunpack.c.l.s4 1983009808
          %v1601 = vunpack.c.0.s8 %v1600
          %v1602 = vlaneseq
          %v1603 = vshrl.u32 %v1602, 7
          %v1604 = vsub.s32 %v1601, %v1603
          %v1605 = vrot.slane %v1597, %v1604
          %v1607 = vunpack.c.l.s4 1983009808
          %v1608 = vunpack.c.0.s8 %v1607
          %v1609 = vlaneseq
          %v1610 = vshrl.u32 %v1609, 7
          %v1611 = vsub.s32 %v1608, %v1610
          %v1612 = vrot.slane %v1598, %v1611
          %v1613 = vcombine.low %v1402, %v1424
          %v1614 = vcombine.high %v1402, %v1424
          %v1616 = vunpack.c.l.s4 1983009808
          %v1617 = vunpack.c.0.s8 %v1616
          %v1618 = vlaneseq
          %v1619 = vshrl.u32 %v1618, 7
          %v1620 = vsub.s32 %v1617, %v1619
          %v1621 = vrot.slane %v1613, %v1620
          %v1623 = vunpack.c.l.s4 1983009808
          %v1624 = vunpack.c.0.s8 %v1623
          %v1625 = vlaneseq
          %v1626 = vshrl.u32 %v1625, 7
          %v1627 = vsub.s32 %v1624, %v1626
          %v1628 = vrot.slane %v1614, %v1627
          %v1629 = vcombine.low %v1573, %v1589
          %v1630 = vcombine.high %v1573, %v1589
          %v1632 = vunpack.c.l.s4 1934713408
          %v1633 = vunpack.c.0.s8 %v1632
          %v1634 = vlaneseq
          %v1635 = vshrl.u32 %v1634, 7
          %v1636 = vsub.s32 %v1633, %v1635
          %v1637 = vrot.slane %v1629, %v1636
          %v1639 = vunpack.c.l.s4 1934713408
          %v1640 = vunpack.c.0.s8 %v1639
          %v1641 = vlaneseq
          %v1642 = vshrl.u32 %v1641, 7
          %v1643 = vsub.s32 %v1640, %v1642
          %v1644 = vrot.slane %v1630, %v1643
          %v1645 = vcombine.low %v1580, %v1596
          %v1646 = vcombine.high %v1580, %v1596
          %v1648 = vunpack.c.l.s4 1934713408
          %v1649 = vunpack.c.0.s8 %v1648
          %v1650 = vlaneseq
          %v1651 = vshrl.u32 %v1650, 7
          %v1652 = vsub.s32 %v1649, %v1651
          %v1653 = vrot.slane %v1645, %v1652
          %v1655 = vunpack.c.l.s4 1934713408
          %v1656 = vunpack.c.0.s8 %v1655
          %v1657 = vlaneseq
          %v1658 = vshrl.u32 %v1657, 7
          %v1659 = vsub.s32 %v1656, %v1658
          %v1660 = vrot.slane %v1646, %v1659
          %v1661 = vcombine.low %v1605, %v1621
          %v1662 = vcombine.high %v1605, %v1621
          %v1664 = vunpack.c.l.s4 1934713408
          %v1665 = vunpack.c.0.s8 %v1664
          %v1666 = vlaneseq
          %v1667 = vshrl.u32 %v1666, 7
          %v1668 = vsub.s32 %v1665, %v1667
          %v1669 = vrot.slane %v1661, %v1668
          %v1671 = vunpack.c.l.s4 1934713408
          %v1672 = vunpack.c.0.s8 %v1671
          %v1673 = vlaneseq
          %v1674 = vshrl.u32 %v1673, 7
          %v1675 = vsub.s32 %v1672, %v1674
          %v1676 = vrot.slane %v1662, %v1675
          %v1677 = vcombine.low %v1612, %v1628
          %v1678 = vcombine.high %v1612, %v1628
          %v1680 = vunpack.c.l.s4 1934713408
          %v1681 = vunpack.c.0.s8 %v1680
          %v1682 = vlaneseq
          %v1683 = vshrl.u32 %v1682, 7
          %v1684 = vsub.s32 %v1681, %v1683
          %v1685 = vrot.slane %v1677, %v1684
          %v1687 = vunpack.c.l.s4 1934713408
          %v1688 = vunpack.c.0.s8 %v1687
          %v1689 = vlaneseq
          %v1690 = vshrl.u32 %v1689, 7
          %v1691 = vsub.s32 %v1688, %v1690
          %v1692 = vrot.slane %v1678, %v1691
          %v1693 = vcombine.low %v1637, %v1669
          %v1694 = vcombine.high %v1637, %v1669
          %v1695 = vcombine.low %v1644, %v1676
          %v1696 = vcombine.high %v1644, %v1676
          %v1697 = vcombine.low %v1653, %v1685
          %v1698 = vcombine.high %v1653, %v1685
          %v1699 = vcombine.low %v1660, %v1692
          %v1700 = vcombine.high %v1660, %v1692
          %v1701 = vcombine.low %v1263, %v1285
          %v1702 = vcombine.high %v1263, %v1285
          %v1704 = vunpack.c.l.s4 1983009808
          %v1705 = vunpack.c.0.s8 %v1704
          %v1706 = vlaneseq
          %v1707 = vshrl.u32 %v1706, 7
          %v1708 = vsub.s32 %v1705, %v1707
          %v1709 = vrot.slane %v1701, %v1708
          %v1711 = vunpack.c.l.s4 1983009808
          %v1712 = vunpack.c.0.s8 %v1711
          %v1713 = vlaneseq
          %v1714 = vshrl.u32 %v1713, 7
          %v1715 = vsub.s32 %v1712, %v1714
          %v1716 = vrot.slane %v1702, %v1715
          %v1717 = vcombine.low %v1274, %v1296
          %v1718 = vcombine.high %v1274, %v1296
          %v1720 = vunpack.c.l.s4 1983009808
          %v1721 = vunpack.c.0.s8 %v1720
          %v1722 = vlaneseq
          %v1723 = vshrl.u32 %v1722, 7
          %v1724 = vsub.s32 %v1721, %v1723
          %v1725 = vrot.slane %v1717, %v1724
          %v1727 = vunpack.c.l.s4 1983009808
          %v1728 = vunpack.c.0.s8 %v1727
          %v1729 = vlaneseq
          %v1730 = vshrl.u32 %v1729, 7
          %v1731 = vsub.s32 %v1728, %v1730
          %v1732 = vrot.slane %v1718, %v1731
          %v1733 = vcombine.low %v1307, %v1329
          %v1734 = vcombine.high %v1307, %v1329
          %v1736 = vunpack.c.l.s4 1983009808
          %v1737 = vunpack.c.0.s8 %v1736
          %v1738 = vlaneseq
          %v1739 = vshrl.u32 %v1738, 7
          %v1740 = vsub.s32 %v1737, %v1739
          %v1741 = vrot.slane %v1733, %v1740
          %v1743 = vunpack.c.l.s4 1983009808
          %v1744 = vunpack.c.0.s8 %v1743
          %v1745 = vlaneseq
          %v1746 = vshrl.u32 %v1745, 7
          %v1747 = vsub.s32 %v1744, %v1746
          %v1748 = vrot.slane %v1734, %v1747
          %v1749 = vcombine.low %v1318, %v1340
          %v1750 = vcombine.high %v1318, %v1340
          %v1752 = vunpack.c.l.s4 1983009808
          %v1753 = vunpack.c.0.s8 %v1752
          %v1754 = vlaneseq
          %v1755 = vshrl.u32 %v1754, 7
          %v1756 = vsub.s32 %v1753, %v1755
          %v1757 = vrot.slane %v1749, %v1756
          %v1759 = vunpack.c.l.s4 1983009808
          %v1760 = vunpack.c.0.s8 %v1759
          %v1761 = vlaneseq
          %v1762 = vshrl.u32 %v1761, 7
          %v1763 = vsub.s32 %v1760, %v1762
          %v1764 = vrot.slane %v1750, %v1763
          %v1765 = vcombine.low %v1709, %v1725
          %v1766 = vcombine.high %v1709, %v1725
          %v1768 = vunpack.c.l.s4 1934713408
          %v1769 = vunpack.c.0.s8 %v1768
          %v1770 = vlaneseq
          %v1771 = vshrl.u32 %v1770, 7
          %v1772 = vsub.s32 %v1769, %v1771
          %v1773 = vrot.slane %v1765, %v1772
          %v1775 = vunpack.c.l.s4 1934713408
          %v1776 = vunpack.c.0.s8 %v1775
          %v1777 = vlaneseq
          %v1778 = vshrl.u32 %v1777, 7
          %v1779 = vsub.s32 %v1776, %v1778
          %v1780 = vrot.slane %v1766, %v1779
          %v1781 = vcombine.low %v1716, %v1732
          %v1782 = vcombine.high %v1716, %v1732
          %v1784 = vunpack.c.l.s4 1934713408
          %v1785 = vunpack.c.0.s8 %v1784
          %v1786 = vlaneseq
          %v1787 = vshrl.u32 %v1786, 7
          %v1788 = vsub.s32 %v1785, %v1787
          %v1789 = vrot.slane %v1781, %v1788
          %v1791 = vunpack.c.l.s4 1934713408
          %v1792 = vunpack.c.0.s8 %v1791
          %v1793 = vlaneseq
          %v1794 = vshrl.u32 %v1793, 7
          %v1795 = vsub.s32 %v1792, %v1794
          %v1796 = vrot.slane %v1782, %v1795
          %v1797 = vcombine.low %v1741, %v1757
          %v1798 = vcombine.high %v1741, %v1757
          %v1800 = vunpack.c.l.s4 1934713408
          %v1801 = vunpack.c.0.s8 %v1800
          %v1802 = vlaneseq
          %v1803 = vshrl.u32 %v1802, 7
          %v1804 = vsub.s32 %v1801, %v1803
          %v1805 = vrot.slane %v1797, %v1804
          %v1807 = vunpack.c.l.s4 1934713408
          %v1808 = vunpack.c.0.s8 %v1807
          %v1809 = vlaneseq
          %v1810 = vshrl.u32 %v1809, 7
          %v1811 = vsub.s32 %v1808, %v1810
          %v1812 = vrot.slane %v1798, %v1811
          %v1813 = vcombine.low %v1748, %v1764
          %v1814 = vcombine.high %v1748, %v1764
          %v1816 = vunpack.c.l.s4 1934713408
          %v1817 = vunpack.c.0.s8 %v1816
          %v1818 = vlaneseq
          %v1819 = vshrl.u32 %v1818, 7
          %v1820 = vsub.s32 %v1817, %v1819
          %v1821 = vrot.slane %v1813, %v1820
          %v1823 = vunpack.c.l.s4 1934713408
          %v1824 = vunpack.c.0.s8 %v1823
          %v1825 = vlaneseq
          %v1826 = vshrl.u32 %v1825, 7
          %v1827 = vsub.s32 %v1824, %v1826
          %v1828 = vrot.slane %v1814, %v1827
          %v1829 = vcombine.low %v1773, %v1805
          %v1830 = vcombine.high %v1773, %v1805
          %v1831 = vcombine.low %v1780, %v1812
          %v1832 = vcombine.high %v1780, %v1812
          %v1833 = vcombine.low %v1789, %v1821
          %v1834 = vcombine.high %v1789, %v1821
          %v1835 = vcombine.low %v1796, %v1828
          %v1836 = vcombine.high %v1796, %v1828
          %v1837 = vcombine.low %v1351, %v1373
          %v1838 = vcombine.high %v1351, %v1373
          %v1840 = vunpack.c.l.s4 1983009808
          %v1841 = vunpack.c.0.s8 %v1840
          %v1842 = vlaneseq
          %v1843 = vshrl.u32 %v1842, 7
          %v1844 = vsub.s32 %v1841, %v1843
          %v1845 = vrot.slane %v1837, %v1844
          %v1847 = vunpack.c.l.s4 1983009808
          %v1848 = vunpack.c.0.s8 %v1847
          %v1849 = vlaneseq
          %v1850 = vshrl.u32 %v1849, 7
          %v1851 = vsub.s32 %v1848, %v1850
          %v1852 = vrot.slane %v1838, %v1851
          %v1853 = vcombine.low %v1362, %v1384
          %v1854 = vcombine.high %v1362, %v1384
          %v1856 = vunpack.c.l.s4 1983009808
          %v1857 = vunpack.c.0.s8 %v1856
          %v1858 = vlaneseq
          %v1859 = vshrl.u32 %v1858, 7
          %v1860 = vsub.s32 %v1857, %v1859
          %v1861 = vrot.slane %v1853, %v1860
          %v1863 = vunpack.c.l.s4 1983009808
          %v1864 = vunpack.c.0.s8 %v1863
          %v1865 = vlaneseq
          %v1866 = vshrl.u32 %v1865, 7
          %v1867 = vsub.s32 %v1864, %v1866
          %v1868 = vrot.slane %v1854, %v1867
          %v1869 = vcombine.low %v1395, %v1417
          %v1870 = vcombine.high %v1395, %v1417
          %v1872 = vunpack.c.l.s4 1983009808
          %v1873 = vunpack.c.0.s8 %v1872
          %v1874 = vlaneseq
          %v1875 = vshrl.u32 %v1874, 7
          %v1876 = vsub.s32 %v1873, %v1875
          %v1877 = vrot.slane %v1869, %v1876
          %v1879 = vunpack.c.l.s4 1983009808
          %v1880 = vunpack.c.0.s8 %v1879
          %v1881 = vlaneseq
          %v1882 = vshrl.u32 %v1881, 7
          %v1883 = vsub.s32 %v1880, %v1882
          %v1884 = vrot.slane %v1870, %v1883
          %v1885 = vcombine.low %v1406, %v1428
          %v1886 = vcombine.high %v1406, %v1428
          %v1888 = vunpack.c.l.s4 1983009808
          %v1889 = vunpack.c.0.s8 %v1888
          %v1890 = vlaneseq
          %v1891 = vshrl.u32 %v1890, 7
          %v1892 = vsub.s32 %v1889, %v1891
          %v1893 = vrot.slane %v1885, %v1892
          %v1895 = vunpack.c.l.s4 1983009808
          %v1896 = vunpack.c.0.s8 %v1895
          %v1897 = vlaneseq
          %v1898 = vshrl.u32 %v1897, 7
          %v1899 = vsub.s32 %v1896, %v1898
          %v1900 = vrot.slane %v1886, %v1899
          %v1901 = vcombine.low %v1845, %v1861
          %v1902 = vcombine.high %v1845, %v1861
          %v1904 = vunpack.c.l.s4 1934713408
          %v1905 = vunpack.c.0.s8 %v1904
          %v1906 = vlaneseq
          %v1907 = vshrl.u32 %v1906, 7
          %v1908 = vsub.s32 %v1905, %v1907
          %v1909 = vrot.slane %v1901, %v1908
          %v1911 = vunpack.c.l.s4 1934713408
          %v1912 = vunpack.c.0.s8 %v1911
          %v1913 = vlaneseq
          %v1914 = vshrl.u32 %v1913, 7
          %v1915 = vsub.s32 %v1912, %v1914
          %v1916 = vrot.slane %v1902, %v1915
          %v1917 = vcombine.low %v1852, %v1868
          %v1918 = vcombine.high %v1852, %v1868
          %v1920 = vunpack.c.l.s4 1934713408
          %v1921 = vunpack.c.0.s8 %v1920
          %v1922 = vlaneseq
          %v1923 = vshrl.u32 %v1922, 7
          %v1924 = vsub.s32 %v1921, %v1923
          %v1925 = vrot.slane %v1917, %v1924
          %v1927 = vunpack.c.l.s4 1934713408
          %v1928 = vunpack.c.0.s8 %v1927
          %v1929 = vlaneseq
          %v1930 = vshrl.u32 %v1929, 7
          %v1931 = vsub.s32 %v1928, %v1930
          %v1932 = vrot.slane %v1918, %v1931
          %v1933 = vcombine.low %v1877, %v1893
          %v1934 = vcombine.high %v1877, %v1893
          %v1936 = vunpack.c.l.s4 1934713408
          %v1937 = vunpack.c.0.s8 %v1936
          %v1938 = vlaneseq
          %v1939 = vshrl.u32 %v1938, 7
          %v1940 = vsub.s32 %v1937, %v1939
          %v1941 = vrot.slane %v1933, %v1940
          %v1943 = vunpack.c.l.s4 1934713408
          %v1944 = vunpack.c.0.s8 %v1943
          %v1945 = vlaneseq
          %v1946 = vshrl.u32 %v1945, 7
          %v1947 = vsub.s32 %v1944, %v1946
          %v1948 = vrot.slane %v1934, %v1947
          %v1949 = vcombine.low %v1884, %v1900
          %v1950 = vcombine.high %v1884, %v1900
          %v1952 = vunpack.c.l.s4 1934713408
          %v1953 = vunpack.c.0.s8 %v1952
          %v1954 = vlaneseq
          %v1955 = vshrl.u32 %v1954, 7
          %v1956 = vsub.s32 %v1953, %v1955
          %v1957 = vrot.slane %v1949, %v1956
          %v1959 = vunpack.c.l.s4 1934713408
          %v1960 = vunpack.c.0.s8 %v1959
          %v1961 = vlaneseq
          %v1962 = vshrl.u32 %v1961, 7
          %v1963 = vsub.s32 %v1960, %v1962
          %v1964 = vrot.slane %v1950, %v1963
          %v1965 = vcombine.low %v1909, %v1941
          %v1966 = vcombine.high %v1909, %v1941
          %v1967 = vcombine.low %v1916, %v1948
          %v1968 = vcombine.high %v1916, %v1948
          %v1969 = vcombine.low %v1925, %v1957
          %v1970 = vcombine.high %v1925, %v1957
          %v1971 = vcombine.low %v1932, %v1964
          %v1972 = vcombine.high %v1932, %v1964
          %1975 = vrot.lane.b32.xlu0 %v1558, 2
          %v1976 = vpop.permute.xlu0 %1975
          %1977 = vrot.lane.b32.xlu0 %v1694, 2
          %v1978 = vpop.permute.xlu0 %1977
          %1983 = vrot.lane.b32.xlu0 %v1559, 4
          %v1984 = vpop.permute.xlu0 %1983
          %1985 = vrot.lane.b32.xlu0 %v1695, 4
          %v1986 = vpop.permute.xlu0 %1985
          %1991 = vrot.lane.b32.xlu0 %v1560, 6
          %v1992 = vpop.permute.xlu0 %1991
          %1993 = vrot.lane.b32.xlu0 %v1696, 6
          %v1994 = vpop.permute.xlu0 %1993
          %1999 = vrot.lane.b32.xlu0 %v1561, 8
          %v2000 = vpop.permute.xlu0 %1999
          %2001 = vrot.lane.b32.xlu0 %v1697, 8
          %v2002 = vpop.permute.xlu0 %2001
          %2007 = vrot.lane.b32.xlu0 %v1562, 10
          %v2008 = vpop.permute.xlu0 %2007
          %2009 = vrot.lane.b32.xlu0 %v1698, 10
          %v2010 = vpop.permute.xlu0 %2009
          %2015 = vrot.lane.b32.xlu0 %v1563, 12
          %v2016 = vpop.permute.xlu0 %2015
          %2017 = vrot.lane.b32.xlu0 %v1699, 12
          %v2018 = vpop.permute.xlu0 %2017
          %2023 = vrot.lane.b32.xlu0 %v1564, 14
          %v2024 = vpop.permute.xlu0 %2023
          %2025 = vrot.lane.b32.xlu0 %v1700, 14
          %v2026 = vpop.permute.xlu0 %2025
          %2031 = vrot.lane.b32.xlu0 %v1829, 16
          %v2032 = vpop.permute.xlu0 %2031
          %2033 = vrot.lane.b32.xlu0 %v1965, 16
          %v2034 = vpop.permute.xlu0 %2033
          %2039 = vrot.lane.b32.xlu0 %v1830, 18
          %v2040 = vpop.permute.xlu0 %2039
          %2041 = vrot.lane.b32.xlu0 %v1966, 18
          %v2042 = vpop.permute.xlu0 %2041
          %2047 = vrot.lane.b32.xlu0 %v1831, 20
          %v2048 = vpop.permute.xlu0 %2047
          %2049 = vrot.lane.b32.xlu0 %v1967, 20
          %v2050 = vpop.permute.xlu0 %2049
          %2055 = vrot.lane.b32.xlu0 %v1832, 22
          %v2056 = vpop.permute.xlu0 %2055
          %2057 = vrot.lane.b32.xlu0 %v1968, 22
          %v2058 = vpop.permute.xlu0 %2057
          %2063 = vrot.lane.b32.xlu0 %v1833, 24
          %v2064 = vpop.permute.xlu0 %2063
          %2065 = vrot.lane.b32.xlu0 %v1969, 24
          %v2066 = vpop.permute.xlu0 %2065
          %2071 = vrot.lane.b32.xlu0 %v1834, 26
          %v2072 = vpop.permute.xlu0 %2071
          %2073 = vrot.lane.b32.xlu0 %v1970, 26
          %v2074 = vpop.permute.xlu0 %2073
          %2079 = vrot.lane.b32.xlu0 %v1835, 28
          %v2080 = vpop.permute.xlu0 %2079
          %2081 = vrot.lane.b32.xlu0 %v1971, 28
          %v2082 = vpop.permute.xlu0 %2081
          %2087 = vrot.lane.b32.xlu0 %v1836, 30
          %v2088 = vpop.permute.xlu0 %2087
          %2089 = vrot.lane.b32.xlu0 %v1972, 30
          %v2090 = vpop.permute.xlu0 %2089
          %v2093 = vsel %vm1148, %v1557, %v1976
          %v2094 = vsel %vm1148, %v1693, %v1978
          %v2095 = vsel %vm1151, %v2093, %v1984
          %v2096 = vsel %vm1151, %v2094, %v1986
          %v2097 = vsel %vm1154, %v2095, %v1992
          %v2098 = vsel %vm1154, %v2096, %v1994
          %v2099 = vsel %vm1157, %v2097, %v2000
          %v2100 = vsel %vm1157, %v2098, %v2002
          %v2101 = vsel %vm1160, %v2099, %v2008
          %v2102 = vsel %vm1160, %v2100, %v2010
          %v2103 = vsel %vm1163, %v2101, %v2016
          %v2104 = vsel %vm1163, %v2102, %v2018
          %v2105 = vsel %vm1166, %v2103, %v2024
          %v2106 = vsel %vm1166, %v2104, %v2026
          %v2107 = vsel %vm266, %v2105, %v2032
          %v2108 = vsel %vm266, %v2106, %v2034
          %v2109 = vsel %vm1171, %v2107, %v2040
          %v2110 = vsel %vm1171, %v2108, %v2042
          %v2111 = vsel %vm1174, %v2109, %v2048
          %v2112 = vsel %vm1174, %v2110, %v2050
          %v2113 = vsel %vm1177, %v2111, %v2056
          %v2114 = vsel %vm1177, %v2112, %v2058
          %v2115 = vsel %vm1180, %v2113, %v2064
          %v2116 = vsel %vm1180, %v2114, %v2066
          %v2117 = vsel %vm1183, %v2115, %v2072
          %v2118 = vsel %vm1183, %v2116, %v2074
          %v2119 = vsel %vm1186, %v2117, %v2080
          %v2120 = vsel %vm1186, %v2118, %v2082
          %v2121 = vsel %vm1189, %v2119, %v2088
          %v2122 = vsel %vm1189, %v2120, %v2090
          %2125 = vrot.lane.b32.xlu0 %v2121, 32
          %v2126 = vpop.permute.xlu0 %2125
          %2127 = vrot.lane.b32.xlu0 %v2122, 32
          %v2128 = vpop.permute.xlu0 %2127
          %v2131 = vsel %vm1200, %v2121, %v2126
          %v2132 = vsel %vm1200, %v2122, %v2128
          %s2133 = scalar_lea.vmem %s248, 16 [#allocation10]
          %2134 = vst.msk [vmem:[%s2133] sm:$0xff] %vm1203, %v2131
          %2135 = vst.msk [vmem:[%s2133 + $0x8] sm:$0xff] %vm1203, %v2132
        $region40: #{tpu_custom_call.1} parent=27 // pred_fallthru
          _
        %p2136 = scmp.ge.s32.totalorder %s35, 2
        // Predicated region
        $region41: #{tpu_custom_call.1} parent=27 // pred_check
          %p2137 = pneg %p2136
        $region42: #{tpu_custom_call.1} parent=27 // pred_check_branch
          %2139 = sbr.rel (%p2137) target = $region44
        $region43: #{tpu_custom_call.1} parent=27 // pred_region
          %s2140 = ssub.s32 %s35, 2
          %s2141 = smul.u32 %s2140, 2
          %s2142 = sadd.s32 %s2141, 4
          %v2143 = vld [vmem:[%s223] sm:$0xff]
          %v2144 = vld [vmem:[%s223 + $0x8] sm:$0xff]
          %s2145 = sld [smem:[#allocation3 + %s2142]]
          %s2146 = sld [smem:[#allocation4 + %s2142]]
          %vm2147 = vcmask 523264
          %v2148 = vsel %vm2147, %v2143, 0.0
          %2149 = vadd.xlane.f32.xlu0 %v2148
          %v2150 = vpop.xlane.xlu0 %2149
          %v2151 = vsel %vm2147, %v2144, 0.0
          %2152 = vadd.xlane.f32.xlu0 %v2151
          %v2153 = vpop.xlane.xlu0 %2152
          %v2154 = vadd.f32 %v2150, %v2153
          %v2155 = vrot.slane %v2154, 4
          %v2156 = vadd.f32 %v2154, %v2155
          %v2157 = vrot.slane %v2156, 2
          %v2158 = vadd.f32 %v2156, %v2157
          %v2159 = vrot.slane %v2158, 1
          %v2160 = vadd.f32 %v2158, %v2159
          %v2161 = vmul.f32 %v2160, 0.0009765625
          %v2162 = vsub.f32 %v2143, %v2161
          %v2163 = vsub.f32 %v2144, %v2161
          %v2164 = vmul.f32 %v2162, %v2162
          %v2165 = vmul.f32 %v2163, %v2163
          %v2166 = vsel %vm2147, %v2164, 0.0
          %2167 = vadd.xlane.f32.xlu0 %v2166
          %v2168 = vpop.xlane.xlu0 %2167
          %v2169 = vsel %vm2147, %v2165, 0.0
          %2170 = vadd.xlane.f32.xlu0 %v2169
          %v2171 = vpop.xlane.xlu0 %2170
          %v2172 = vadd.f32 %v2168, %v2171
          %v2173 = vrot.slane %v2172, 4
          %v2174 = vadd.f32 %v2172, %v2173
          %v2175 = vrot.slane %v2174, 2
          %v2176 = vadd.f32 %v2174, %v2175
          %v2177 = vrot.slane %v2176, 1
          %v2178 = vadd.f32 %v2176, %v2177
          %v2179 = vmul.f32 %v2178, 0.0009765625
          %v2180 = vadd.f32 %v2179, 1e-05
          %v2181 = vrsqrt.pop %v2180
          %v2182 = vstv %s2145
          %v2183 = vmul.f32 %v2181, %v2182
          %v2184 = vmul.f32 %v2162, %v2183
          %v2185 = vmul.f32 %v2163, %v2183
          %v2186 = vstv %s2146
          %v2187 = vadd.f32 %v2184, %v2186
          %v2188 = vadd.f32 %v2185, %v2186
          %2189 = vst.msk [vmem:[%s248] sm:$0xff] %vm2147, %v2187
          %2190 = vst.msk [vmem:[%s248 + $0x8] sm:$0xff] %vm2147, %v2188
          %s2191 = sadd.s32 %s2141, 5
          %s2192 = scalar_lea.vmem %s223, 16 [#allocation8]
          %v2193 = vld [vmem:[%s2192] sm:$0xff]
          %v2194 = vld [vmem:[%s2192 + $0x8] sm:$0xff]
          %s2195 = sld [smem:[#allocation3 + %s2191]]
          %s2196 = sld [smem:[#allocation4 + %s2191]]
          %v2197 = vsel %vm2147, %v2193, 0.0
          %2198 = vadd.xlane.f32.xlu0 %v2197
          %v2199 = vpop.xlane.xlu0 %2198
          %v2200 = vsel %vm2147, %v2194, 0.0
          %2201 = vadd.xlane.f32.xlu0 %v2200
          %v2202 = vpop.xlane.xlu0 %2201
          %v2203 = vadd.f32 %v2199, %v2202
          %v2204 = vrot.slane %v2203, 4
          %v2205 = vadd.f32 %v2203, %v2204
          %v2206 = vrot.slane %v2205, 2
          %v2207 = vadd.f32 %v2205, %v2206
          %v2208 = vrot.slane %v2207, 1
          %v2209 = vadd.f32 %v2207, %v2208
          %v2210 = vmul.f32 %v2209, 0.0009765625
          %v2211 = vsub.f32 %v2193, %v2210
          %v2212 = vsub.f32 %v2194, %v2210
          %v2213 = vmul.f32 %v2211, %v2211
          %v2214 = vmul.f32 %v2212, %v2212
          %v2215 = vsel %vm2147, %v2213, 0.0
          %2216 = vadd.xlane.f32.xlu0 %v2215
          %v2217 = vpop.xlane.xlu0 %2216
          %v2218 = vsel %vm2147, %v2214, 0.0
          %2219 = vadd.xlane.f32.xlu0 %v2218
          %v2220 = vpop.xlane.xlu0 %2219
          %v2221 = vadd.f32 %v2217, %v2220
          %v2222 = vrot.slane %v2221, 4
          %v2223 = vadd.f32 %v2221, %v2222
          %v2224 = vrot.slane %v2223, 2
          %v2225 = vadd.f32 %v2223, %v2224
          %v2226 = vrot.slane %v2225, 1
          %v2227 = vadd.f32 %v2225, %v2226
          %v2228 = vmul.f32 %v2227, 0.0009765625
          %v2229 = vadd.f32 %v2228, 1e-05
          %v2230 = vrsqrt.pop %v2229
          %v2231 = vstv %s2195
          %v2232 = vmul.f32 %v2230, %v2231
          %v2233 = vmul.f32 %v2211, %v2232
          %v2234 = vmul.f32 %v2212, %v2232
          %v2235 = vstv %s2196
          %v2236 = vadd.f32 %v2233, %v2235
          %v2237 = vadd.f32 %v2234, %v2235
          %s2238 = scalar_lea.vmem %s248, 16 [#allocation10]
          %2239 = vst.msk [vmem:[%s2238] sm:$0xff] %vm2147, %v2236
          %2240 = vst.msk [vmem:[%s2238 + $0x8] sm:$0xff] %vm2147, %v2237
        $region44: #{tpu_custom_call.1} parent=27 // pred_fallthru
          _
        %s2241 = sand.u32 %s118, 1
        %s2242 = scalar_lea.sflag [#allocation7], %s2241
        %s2243 = sand.u32 %s118, 1
        %s2244 = smul.addr %s2243, 32
        %s2245 = scalar_lea.vmem [#allocation10], %s2244
        // Predicated region
        $region45: #{tpu_custom_call.1} parent=27 // pred_check
          %p2246 = pneg %p128
        $region46: #{tpu_custom_call.1} parent=27 // pred_check_branch
          %2248 = sbr.rel (%p2246) target = $region48
        $region47: #{tpu_custom_call.1} parent=27 // pred_region
          %s2249 = smul.u32 2, %s35
          %s2251 = ssub.s32 512, 512
          %2252 = vsyncadd %s2242, %s2251
          %s2253 = smul.addr %s2249, 2
          %s2254 = smul.addr %s34, 16
          %s2255 = sadd.s32 %s2253, %s2254
          %s2256 = smul.addr %s2255, 128
          %s2257 = scalar_lea.hbm %s4, %s2256
          %s2258 = sshll.u32 %s2245, 4
          %s2259 = int_to_ptr.vmem [resolvable:$true] %s2258
          %2264 = dma.vmem_to_hbm [thread:$0]  %s2259, 512, %s2257, %s2242, 128, 128, 8
        $region48: #{tpu_custom_call.1} parent=27 // pred_fallthru
          _
      $region28: #{tpu_custom_call.1} parent=5 // pred_fallthru
        _
      %p2265 = scmp.le.s32.totalorder 2, %s25
      // Predicated region
      $region49: #{tpu_custom_call.1} parent=5 // pred_check
        %p2266 = pneg %p2265
      $region50: #{tpu_custom_call.1} parent=5 // pred_check_branch
        %2268 = sbr.rel (%p2266) target = $region52
      $region51: #{tpu_custom_call.1} parent=5 // pred_region
        %s2269 = ssub.s32 %s25, 2
        // Predicated region
        $region53: #{tpu_custom_call.1} parent=51 // pred_check
          %p2270 = pneg %p134
        $region54: #{tpu_custom_call.1} parent=51 // pred_check_branch
          %2272 = sbr.rel (%p2270) target = $region56
        $region55: #{tpu_custom_call.1} parent=51 // pred_region
          %s2273 = sand.u32 %s119, 1
          %s2274 = scalar_lea.sflag [#allocation7], %s2273
          %s2275 = sand.u32 %s119, 1
          %s2276 = smul.addr %s2275, 32
          %s2277 = scalar_lea.vmem [#allocation10], %s2276
          %2278 = dma.done %s2274, 512
        $region56: #{tpu_custom_call.1} parent=51 // pred_fallthru
          _
      $region52: #{tpu_custom_call.1} parent=5 // pred_fallthru
        _
    $region6: #{tpu_custom_call.1} parent=1 // loop_footer
      %s29 = sadd.s32 1, %s25
    $region7: #{tpu_custom_call.1} parent=1 // loop_footer_branch
      %24 = sbr.rel target = $region3
    $region8: #{tpu_custom_call.1} parent=1 // loop_exit
      _
    %2279 = vsyncpa [#allocation6], 1
    %s2280 = scalar_lea.sflag [#allocation6], 1
    %2281 = vsyncpa %s2280, 1
    %2282 = vsyncpa [#allocation9], 1
    %s2283 = scalar_lea.sflag [#allocation9], 1
    %2284 = vsyncpa %s2283, 1
    %2285 = vsyncpa [#allocation7], 1
    %s2286 = scalar_lea.sflag [#allocation7], 1
    %2287 = vsyncpa %s2286, 1

// kernel: tpu_custom_call.1
$region0: #{tpu_custom_call.1}
  #allocation0 [shape = 'u32[]', space=smem, size = 0x4, offset = 0x4, fixed_abs, tag = 'smem constant byte address 0x4 - core index']
  #allocation1 [shape = 'u32[144,128]{1,0:T(1,128)}', space=vmem, size = 0x12000, scoped, tag = 'internal scratch']
  #allocation2 [shape = 's32[1]{0}', space=sflag, size = 0x4, scoped, tag = 'scoped memory for tpu_custom_call.1']
  #allocation3 [shape = 'u8[512]{0}', space=smem, size = 0x200, scoped, tag = 'prefetched SMEM operand 0']
  #allocation4 [shape = 'u8[512]{0}', space=smem, size = 0x200, scoped, tag = 'prefetched SMEM operand 1']
  %s0 = inlined_call_operand.hbm [shape: f32[8], index: 0, kind: input, shape index: {}]
  %s1 = inlined_call_operand.hbm [shape: f32[8], index: 1, kind: input, shape index: {}]
  %s2 = inlined_call_operand.hbm [shape: f32[2,4,16,32], index: 2, kind: input, shape index: {}]
  %s3 = inlined_call_operand.hbm [shape: f32[2,4,16,64], index: 3, kind: input, shape index: {}]
  %s4 = inlined_call_operand.hbm [shape: f32[2,8,16,64], index: 4, kind: output, shape index: {}]
  %s5 = sld [smem:[#allocation0]]
  $region57: #{tpu_custom_call.1} parent=0
    _
  %s7 = ssub.s32 1, %s5
  %s8 = scalar_select 0, %s7, %s5
  %10 = dma.hbm_to_smem %s0, 16, [#allocation3], [#allocation2]
  %12 = dma.hbm_to_smem %s1, 16, [#allocation4], [#allocation2]
  %13 = dma.done [#allocation2], 32
  %14 = sfence
  $region1: #{tpu_custom_call.1} parent=0
    #allocation5 [shape = 'u8[32768]{0}', space=vmem, size = 0x8000, scoped, tag = 'input window, operand 2']
    #allocation6 [shape = 's32[2]{0}', space=sflag, size = 0x8, scoped, tag = 'scoped memory for tpu_custom_call.1']
    #allocation7 [shape = 's32[2]{0}', space=sflag, size = 0x8, scoped, tag = 'scoped memory for tpu_custom_call.1']
    #allocation8 [shape = 'u8[32768]{0}', space=vmem, size = 0x8000, scoped, tag = 'input window, operand 3']
    #allocation9 [shape = 's32[2]{0}', space=sflag, size = 0x8, scoped, tag = 'scoped memory for tpu_custom_call.1']
    #allocation10 [shape = 'u8[32768]{0}', space=vmem, size = 0x8000, scoped, tag = 'output window, operand 0']
    %15 = vsyncpa [#allocation6], 0
    %s16 = scalar_lea.sflag [#allocation6], 1
    %17 = vsyncpa %s16, 0
    %18 = vsyncpa [#allocation9], 0
    %s19 = scalar_lea.sflag [#allocation9], 1
    %20 = vsyncpa %s19, 0
    %21 = vsyncpa [#allocation7], 0
    %s22 = scalar_lea.sflag [#allocation7], 1
    %23 = vsyncpa %s22, 0
    loop: start=0, step=1, limit=10
    $region2: #{tpu_custom_call.1} parent=1 // loop_pre_header
      _
    $region3: #{tpu_custom_call.1} parent=1 // loop_header
      %s25 = sphi 0, %s29
      %p26 = scmp.ge.s32.totalorder %s25, 10
      %s32 = sphi 0, %s44
      %s33 = sphi 0, %s40
      %s34 = sphi 0, %s32
      %s35 = sphi 0, %s33
      %s36 = sphi 0, %s34
      %s37 = sphi 0, %s35
      %s53 = sphi 0, %s55
      %s56 = sphi 0, %s53
      %s57 = sphi 0, %s56
      %s73 = sphi 0, %s57
      %s87 = sphi 0, %s89
      %s90 = sphi 0, %s87
      %s91 = sphi 0, %s90
      %s107 = sphi 0, %s91
      %s115 = sphi 0, %s117
      %s118 = sphi 0, %s115
      %s119 = sphi 0, %s118
      %s135 = sphi 0, %s119
    $region4: #{tpu_custom_call.1} parent=1 // loop_header_branch
      %28 = sbr.rel (%p26) target = $region8
    $region5: #{tpu_custom_call.1} parent=1 // loop_body
      %s30 = ssub.s32 %s25, 1
      %s31 = ssub.s32 %s25, 2
      %s38 = sadd.s32 1, %s33
      %p39 = scmp.ge.s32.totalorder %s38, 4
      %s40 = scalar_select %p39, 0, %s38
      %s41 = sadd.s32 1, %s32
      %s42 = scalar_select %p39, %s41, %s32
      %p43 = scmp.ge.s32.totalorder %s42, 2
      %s44 = scalar_select %p43, 0, %s42
      %p45 = scmp.lt.s32.totalorder %s33, 1
      %s46 = scalar_select %p45, %s33, 1
      %p47 = scmp.lt.s32.totalorder %s40, 1
      %s48 = scalar_select %p47, %s40, 1
      %s49 = ssub.s32 %s32, %s44
      %s50 = ssub.s32 %s46, %s48
      %s51 = sor.u32 %s49, %s50
      %p52 = scmp.eq.s32.totalorder %s51, 0
      %s54 = sadd.s32 %s53, 1
      %s55 = scalar_select %p52, %s53, %s54
      %p58 = pneg %p52
      %p59 = scmp.eq.s32.totalorder %s25, 7
      %p60 = por %p58, %p59
      %p61 = scmp.ne.s32.totalorder %s53, %s56
      %p62 = scmp.eq.s32.totalorder %s25, 0
      %p63 = por %p61, %p62
      %p64 = scmp.ne.s32.totalorder %s53, %s56
      %p65 = scmp.eq.s32.totalorder %s30, 7
      %p66 = por %p64, %p65
      %p67 = scmp.ne.s32.totalorder %s56, %s57
      %p68 = scmp.eq.s32.totalorder %s30, 0
      %p69 = por %p67, %p68
      %p70 = scmp.ne.s32.totalorder %s56, %s57
      %p71 = scmp.eq.s32.totalorder %s31, 7
      %p72 = por %p70, %p71
      %p74 = scmp.ne.s32.totalorder %s57, %s73
      %p75 = scmp.eq.s32.totalorder %s31, 0
      %p76 = por %p74, %p75
      %s77 = ssub.s32 %s33, 2
      %p78 = scmp.gt.s32.totalorder %s77, 0
      %s79 = scalar_select %p78, %s77, 0
      %s80 = ssub.s32 %s40, 2
      %p81 = scmp.gt.s32.totalorder %s80, 0
      %s82 = scalar_select %p81, %s80, 0
      %s83 = ssub.s32 %s32, %s44
      %s84 = ssub.s32 %s79, %s82
      %s85 = sor.u32 %s83, %s84
      %p86 = scmp.eq.s32.totalorder %s85, 0
      %s88 = sadd.s32 %s87, 1
      %s89 = scalar_select %p86, %s87, %s88
      %p92 = pneg %p86
      %p93 = scmp.eq.s32.totalorder %s25, 7
      %p94 = por %p92, %p93
      %p95 = scmp.ne.s32.totalorder %s87, %s90
      %p96 = scmp.eq.s32.totalorder %s25, 0
      %p97 = por %p95, %p96
      %p98 = scmp.ne.s32.totalorder %s87, %s90
      %p99 = scmp.eq.s32.totalorder %s30, 7
      %p100 = por %p98, %p99
      %p101 = scmp.ne.s32.totalorder %s90, %s91
      %p102 = scmp.eq.s32.totalorder %s30, 0
      %p103 = por %p101, %p102
      %p104 = scmp.ne.s32.totalorder %s90, %s91
      %p105 = scmp.eq.s32.totalorder %s31, 7
      %p106 = por %p104, %p105
      %p108 = scmp.ne.s32.totalorder %s91, %s107
      %p109 = scmp.eq.s32.totalorder %s31, 0
      %p110 = por %p108, %p109
      %s111 = ssub.s32 %s32, %s44
      %s112 = ssub.s32 %s33, %s40
      %s113 = sor.u32 %s111, %s112
      %p114 = scmp.eq.s32.totalorder %s113, 0
      %s116 = sadd.s32 %s115, 1
      %s117 = scalar_select %p114, %s115, %s116
      %p120 = pneg %p114
      %p121 = scmp.eq.s32.totalorder %s25, 7
      %p122 = por %p120, %p121
      %p123 = scmp.ne.s32.totalorder %s115, %s118
      %p124 = scmp.eq.s32.totalorder %s25, 0
      %p125 = por %p123, %p124
      %p126 = scmp.ne.s32.totalorder %s115, %s118
      %p127 = scmp.eq.s32.totalorder %s30, 7
      %p128 = por %p126, %p127
      %p129 = scmp.ne.s32.totalorder %s118, %s119
      %p130 = scmp.eq.s32.totalorder %s30, 0
      %p131 = por %p129, %p130
      %p132 = scmp.ne.s32.totalorder %s118, %s119
      %p133 = scmp.eq.s32.totalorder %s31, 7
      %p134 = por %p132, %p133
      %p136 = scmp.ne.s32.totalorder %s119, %s135
      %p137 = scmp.eq.s32.totalorder %s31, 0
      %p138 = por %p136, %p137
      %p139 = scmp.le.s32.totalorder 1, %s25
      %p140 = scmp.lt.s32.totalorder %s25, 9
      %p141 = pnand %p139, %p140
      %p142 = pneg %p141
      // Predicated region
      $region9: #{tpu_custom_call.1} parent=5 // pred_check
        _
      $region10: #{tpu_custom_call.1} parent=5 // pred_check_branch
        %144 = sbr.rel (%p141) target = $region12
      $region11: #{tpu_custom_call.1} parent=5 // pred_region
        %s145 = ssub.s32 %s25, 1
      $region12: #{tpu_custom_call.1} parent=5 // pred_fallthru
        _
      %p146 = scmp.lt.s32.totalorder %s25, 8
      // Predicated region
      $region13: #{tpu_custom_call.1} parent=5 // pred_check
        %p147 = pneg %p146
      $region14: #{tpu_custom_call.1} parent=5 // pred_check_branch
        %149 = sbr.rel (%p147) target = $region16
      $region15: #{tpu_custom_call.1} parent=5 // pred_region
        // Predicated region
        $region17: #{tpu_custom_call.1} parent=15 // pred_check
          %p150 = pneg %p63
        $region18: #{tpu_custom_call.1} parent=15 // pred_check_branch
          %152 = sbr.rel (%p150) target = $region20
        $region19: #{tpu_custom_call.1} parent=15 // pred_region
          %s153 = sand.u32 %s53, 1
          %s154 = scalar_lea.sflag [#allocation6], %s153
          %s155 = sand.u32 %s53, 1
          %s156 = smul.addr %s155, 32
          %s157 = scalar_lea.vmem [#allocation5], %s156
          %p158 = scmp.lt.s32.totalorder %s33, 1
          %s159 = scalar_select %p158, %s33, 1
          %s160 = smul.u32 2, %s159
          %s162 = ssub.s32 512, 512
          %163 = vsyncadd %s154, %s162
          %s164 = smul.addr %s160, 2
          %s165 = smul.addr %s32, 8
          %s166 = sadd.s32 %s164, %s165
          %s167 = smul.addr %s166, 128
          %s168 = scalar_lea.hbm %s2, %s167
          %s169 = sshll.u32 %s157, 4
          %s170 = int_to_ptr.vmem [resolvable:$true] %s169
          %175 = dma.hbm_to_vmem [thread:$0]  %s168, 512, %s170, %s154, 128, 128, 8
        $region20: #{tpu_custom_call.1} parent=15 // pred_fallthru
          _
        // Predicated region
        $region21: #{tpu_custom_call.1} parent=15 // pred_check
          %p176 = pneg %p97
        $region22: #{tpu_custom_call.1} parent=15 // pred_check_branch
          %178 = sbr.rel (%p176) target = $region24
        $region23: #{tpu_custom_call.1} parent=15 // pred_region
          %s179 = sand.u32 %s87, 1
          %s180 = scalar_lea.sflag [#allocation9], %s179
          %s181 = sand.u32 %s87, 1
          %s182 = smul.addr %s181, 32
          %s183 = scalar_lea.vmem [#allocation8], %s182
          %s184 = ssub.s32 %s33, 2
          %p185 = scmp.gt.s32.totalorder %s184, 0
          %s186 = scalar_select %p185, %s184, 0
          %s187 = smul.u32 2, %s186
          %s189 = ssub.s32 512, 512
          %190 = vsyncadd %s180, %s189
          %s191 = smul.addr %s187, 2
          %s192 = smul.addr %s32, 8
          %s193 = sadd.s32 %s191, %s192
          %s194 = smul.addr %s193, 128
          %s195 = scalar_lea.hbm %s3, %s194
          %s196 = sshll.u32 %s183, 4
          %s197 = int_to_ptr.vmem [resolvable:$true] %s196
          %202 = dma.hbm_to_vmem [thread:$0]  %s195, 512, %s197, %s180, 128, 128, 8
        $region24: #{tpu_custom_call.1} parent=15 // pred_fallthru
          _
      $region16: #{tpu_custom_call.1} parent=5 // pred_fallthru
        _
      %p203 = scmp.le.s32.totalorder 1, %s25
      %p204 = scmp.lt.s32.totalorder %s25, 9
      %p205 = pnand %p203, %p204
      %p206 = pneg %p205
      // Predicated region
      $region25: #{tpu_custom_call.1} parent=5 // pred_check
        _
      $region26: #{tpu_custom_call.1} parent=5 // pred_check_branch
        %208 = sbr.rel (%p205) target = $region28
      $region27: #{tpu_custom_call.1} parent=5 // pred_region
        %s209 = ssub.s32 %s25, 1
        %s210 = sand.u32 %s56, 1
        %s211 = scalar_lea.sflag [#allocation6], %s210
        %s212 = sand.u32 %s56, 1
        %s213 = smul.addr %s212, 32
        %s214 = scalar_lea.vmem [#allocation5], %s213
        // Predicated region
        $region29: #{tpu_custom_call.1} parent=27 // pred_check
          %p215 = pneg %p69
        $region30: #{tpu_custom_call.1} parent=27 // pred_check_branch
          %217 = sbr.rel (%p215) target = $region32
        $region31: #{tpu_custom_call.1} parent=27 // pred_region
          %218 = dma.done %s211, 512
        $region32: #{tpu_custom_call.1} parent=27 // pred_fallthru
          _
        %s219 = sand.u32 %s90, 1
        %s220 = scalar_lea.sflag [#allocation9], %s219
        %s221 = sand.u32 %s90, 1
        %s222 = smul.addr %s221, 32
        %s223 = scalar_lea.vmem [#allocation8], %s222
        // Predicated region
        $region33: #{tpu_custom_call.1} parent=27 // pred_check
          %p224 = pneg %p103
        $region34: #{tpu_custom_call.1} parent=27 // pred_check_branch
          %226 = sbr.rel (%p224) target = $region36
        $region35: #{tpu_custom_call.1} parent=27 // pred_region
          %227 = dma.done %s220, 512
        $region36: #{tpu_custom_call.1} parent=27 // pred_fallthru
          _
        %s228 = sand.u32 %s56, 1
        %s229 = scalar_lea.sflag [#allocation6], %s228
        %s230 = sand.u32 %s56, 1
        %s231 = smul.addr %s230, 32
        %s232 = scalar_lea.vmem [#allocation5], %s231
        %p233 = pneg %p69
        %p234 = pneg %p66
        %s235 = sand.u32 %s90, 1
        %s236 = scalar_lea.sflag [#allocation9], %s235
        %s237 = sand.u32 %s90, 1
        %s238 = smul.addr %s237, 32
        %s239 = scalar_lea.vmem [#allocation8], %s238
        %p240 = pneg %p103
        %p241 = pneg %p100
        %p242 = pneg %p131
        %p243 = pneg %p128
        %s244 = sand.u32 %s118, 1
        %s245 = scalar_lea.sflag [#allocation7], %s244
        %s246 = sand.u32 %s118, 1
        %s247 = smul.addr %s246, 32
        %s248 = scalar_lea.vmem [#allocation10], %s247
        %p249 = scmp.lt.s32.totalorder %s35, 1
        %s250 = scalar_select %p249, %s35, 1
        %s251 = smul.u32 2, %s250
        %s252 = ssub.s32 %s35, 2
        %p253 = scmp.gt.s32.totalorder %s252, 0
        %s254 = scalar_select %p253, %s252, 0
        %s255 = smul.u32 2, %s254
        %s256 = smul.u32 2, %s35
        %p257 = scmp.lt.s32.totalorder %s35, 2
        // Predicated region
        $region37: #{tpu_custom_call.1} parent=27 // pred_check
          %p258 = pneg %p257
        $region38: #{tpu_custom_call.1} parent=27 // pred_check_branch
          %260 = sbr.rel (%p258) target = $region40
        $region39: #{tpu_custom_call.1} parent=27 // pred_region
          %s261 = smul.u32 %s35, 2
          %v262 = vld [vmem:[%s214] sm:$0xff]
          %v263 = vld [vmem:[%s214 + $0x8] sm:$0xff]
          %s264 = sld [smem:[#allocation3 + %s261]]
          %s265 = sld [smem:[#allocation4 + %s261]]
          %vm266 = vcmask 261120
          %v267 = vsel %vm266, %v262, 0.0
          %268 = vadd.xlane.f32.xlu0 %v267
          %v269 = vpop.xlane.xlu0 %268
          %v270 = vsel %vm266, %v263, 0.0
          %271 = vadd.xlane.f32.xlu0 %v270
          %v272 = vpop.xlane.xlu0 %271
          %v273 = vadd.f32 %v269, %v272
          %v274 = vrot.slane %v273, 4
          %v275 = vadd.f32 %v273, %v274
          %v276 = vrot.slane %v275, 2
          %v277 = vadd.f32 %v275, %v276
          %v278 = vrot.slane %v277, 1
          %v279 = vadd.f32 %v277, %v278
          %v280 = vmul.f32 %v279, 0.001953125
          %v281 = vsub.f32 %v262, %v280
          %v282 = vsub.f32 %v263, %v280
          %v283 = vmul.f32 %v281, %v281
          %v284 = vmul.f32 %v282, %v282
          %v285 = vsel %vm266, %v283, 0.0
          %286 = vadd.xlane.f32.xlu0 %v285
          %v287 = vpop.xlane.xlu0 %286
          %v288 = vsel %vm266, %v284, 0.0
          %289 = vadd.xlane.f32.xlu0 %v288
          %v290 = vpop.xlane.xlu0 %289
          %v291 = vadd.f32 %v287, %v290
          %v292 = vrot.slane %v291, 4
          %v293 = vadd.f32 %v291, %v292
          %v294 = vrot.slane %v293, 2
          %v295 = vadd.f32 %v293, %v294
          %v296 = vrot.slane %v295, 1
          %v297 = vadd.f32 %v295, %v296
          %v298 = vmul.f32 %v297, 0.001953125
          %v299 = vadd.f32 %v298, 1e-05
          %v300 = vrsqrt.pop %v299
          %v301 = vstv %s264
          %v302 = vmul.f32 %v300, %v301
          %v303 = vmul.f32 %v281, %v302
          %v304 = vmul.f32 %v282, %v302
          %v305 = vstv %s265
          %v306 = vadd.f32 %v303, %v305
          %v307 = vadd.f32 %v304, %v305
          %310 = vrot.lane.b32.xlu0 %v306, 32
          %v311 = vpop.permute.xlu0 %310
          %312 = vrot.lane.b32.xlu0 %v307, 32
          %v313 = vpop.permute.xlu0 %312
          %v316 = vsel %vm266, %v306, %v311
          %v317 = vsel %vm266, %v307, %v313
          %vm318 = vcmask 523264
          %319 = vst.msk [vmem:[%s248] sm:$0xff] %vm318, %v316
          %320 = vst.msk [vmem:[%s248 + $0x8] sm:$0xff] %vm318, %v317
          %s321 = sadd.s32 %s261, 1
          %s322 = scalar_lea.vmem %s214, 16 [#allocation5]
          %v323 = vld [vmem:[%s322] sm:$0xff]
          %v324 = vld [vmem:[%s322 + $0x8] sm:$0xff]
          %s325 = sld [smem:[#allocation3 + %s321]]
          %s326 = sld [smem:[#allocation4 + %s321]]
          %v327 = vsel %vm266, %v323, 0.0
          %328 = vadd.xlane.f32.xlu0 %v327
          %v329 = vpop.xlane.xlu0 %328
          %v330 = vsel %vm266, %v324, 0.0
          %331 = vadd.xlane.f32.xlu0 %v330
          %v332 = vpop.xlane.xlu0 %331
          %v333 = vadd.f32 %v329, %v332
          %v334 = vrot.slane %v333, 4
          %v335 = vadd.f32 %v333, %v334
          %v336 = vrot.slane %v335, 2
          %v337 = vadd.f32 %v335, %v336
          %v338 = vrot.slane %v337, 1
          %v339 = vadd.f32 %v337, %v338
          %v340 = vmul.f32 %v339, 0.001953125
          %v341 = vsub.f32 %v323, %v340
          %v342 = vsub.f32 %v324, %v340
          %v343 = vmul.f32 %v341, %v341
          %v344 = vmul.f32 %v342, %v342
          %v345 = vsel %vm266, %v343, 0.0
          %346 = vadd.xlane.f32.xlu0 %v345
          %v347 = vpop.xlane.xlu0 %346
          %v348 = vsel %vm266, %v344, 0.0
          %349 = vadd.xlane.f32.xlu0 %v348
          %v350 = vpop.xlane.xlu0 %349
          %v351 = vadd.f32 %v347, %v350
          %v352 = vrot.slane %v351, 4
          %v353 = vadd.f32 %v351, %v352
          %v354 = vrot.slane %v353, 2
          %v355 = vadd.f32 %v353, %v354
          %v356 = vrot.slane %v355, 1
          %v357 = vadd.f32 %v355, %v356
          %v358 = vmul.f32 %v357, 0.001953125
          %v359 = vadd.f32 %v358, 1e-05
          %v360 = vrsqrt.pop %v359
          %v361 = vstv %s325
          %v362 = vmul.f32 %v360, %v361
          %v363 = vmul.f32 %v341, %v362
          %v364 = vmul.f32 %v342, %v362
          %v365 = vstv %s326
          %v366 = vadd.f32 %v363, %v365
          %v367 = vadd.f32 %v364, %v365
          %370 = vrot.lane.b32.xlu0 %v366, 32
          %v371 = vpop.permute.xlu0 %370
          %372 = vrot.lane.b32.xlu0 %v367, 32
          %v373 = vpop.permute.xlu0 %372
          %v376 = vsel %vm266, %v366, %v371
          %v377 = vsel %vm266, %v367, %v373
          %s378 = scalar_lea.vmem %s248, 16 [#allocation10]
          %379 = vst.msk [vmem:[%s378] sm:$0xff] %vm318, %v376
          %380 = vst.msk [vmem:[%s378 + $0x8] sm:$0xff] %vm318, %v377
        $region40: #{tpu_custom_call.1} parent=27 // pred_fallthru
          _
        %p381 = scmp.ge.s32.totalorder %s35, 2
        // Predicated region
        $region41: #{tpu_custom_call.1} parent=27 // pred_check
          %p382 = pneg %p381
        $region42: #{tpu_custom_call.1} parent=27 // pred_check_branch
          %384 = sbr.rel (%p382) target = $region44
        $region43: #{tpu_custom_call.1} parent=27 // pred_region
          %s385 = ssub.s32 %s35, 2
          %s386 = smul.u32 %s385, 2
          %s387 = sadd.s32 %s386, 4
          %v388 = vld [vmem:[%s223] sm:$0xff]
          %v389 = vld [vmem:[%s223 + $0x8] sm:$0xff]
          %s390 = sld [smem:[#allocation3 + %s387]]
          %s391 = sld [smem:[#allocation4 + %s387]]
          %vm392 = vcmask 523264
          %v393 = vsel %vm392, %v388, 0.0
          %394 = vadd.xlane.f32.xlu0 %v393
          %v395 = vpop.xlane.xlu0 %394
          %v396 = vsel %vm392, %v389, 0.0
          %397 = vadd.xlane.f32.xlu0 %v396
          %v398 = vpop.xlane.xlu0 %397
          %v399 = vadd.f32 %v395, %v398
          %v400 = vrot.slane %v399, 4
          %v401 = vadd.f32 %v399, %v400
          %v402 = vrot.slane %v401, 2
          %v403 = vadd.f32 %v401, %v402
          %v404 = vrot.slane %v403, 1
          %v405 = vadd.f32 %v403, %v404
          %v406 = vmul.f32 %v405, 0.0009765625
          %v407 = vsub.f32 %v388, %v406
          %v408 = vsub.f32 %v389, %v406
          %v409 = vmul.f32 %v407, %v407
          %v410 = vmul.f32 %v408, %v408
          %v411 = vsel %vm392, %v409, 0.0
          %412 = vadd.xlane.f32.xlu0 %v411
          %v413 = vpop.xlane.xlu0 %412
          %v414 = vsel %vm392, %v410, 0.0
          %415 = vadd.xlane.f32.xlu0 %v414
          %v416 = vpop.xlane.xlu0 %415
          %v417 = vadd.f32 %v413, %v416
          %v418 = vrot.slane %v417, 4
          %v419 = vadd.f32 %v417, %v418
          %v420 = vrot.slane %v419, 2
          %v421 = vadd.f32 %v419, %v420
          %v422 = vrot.slane %v421, 1
          %v423 = vadd.f32 %v421, %v422
          %v424 = vmul.f32 %v423, 0.0009765625
          %v425 = vadd.f32 %v424, 1e-05
          %v426 = vrsqrt.pop %v425
          %v427 = vstv %s390
          %v428 = vmul.f32 %v426, %v427
          %v429 = vmul.f32 %v407, %v428
          %v430 = vmul.f32 %v408, %v428
          %v431 = vstv %s391
          %v432 = vadd.f32 %v429, %v431
          %v433 = vadd.f32 %v430, %v431
          %434 = vst.msk [vmem:[%s248] sm:$0xff] %vm392, %v432
          %435 = vst.msk [vmem:[%s248 + $0x8] sm:$0xff] %vm392, %v433
          %s436 = sadd.s32 %s386, 5
          %s437 = scalar_lea.vmem %s223, 16 [#allocation8]
          %v438 = vld [vmem:[%s437] sm:$0xff]
          %v439 = vld [vmem:[%s437 + $0x8] sm:$0xff]
          %s440 = sld [smem:[#allocation3 + %s436]]
          %s441 = sld [smem:[#allocation4 + %s436]]
          %v442 = vsel %vm392, %v438, 0.0
          %443 = vadd.xlane.f32.xlu0 %v442
          %v444 = vpop.xlane.xlu0 %443
          %v445 = vsel %vm392, %v439, 0.0
          %446 = vadd.xlane.f32.xlu0 %v445
          %v447 = vpop.xlane.xlu0 %446
          %v448 = vadd.f32 %v444, %v447
          %v449 = vrot.slane %v448, 4
          %v450 = vadd.f32 %v448, %v449
          %v451 = vrot.slane %v450, 2
          %v452 = vadd.f32 %v450, %v451
          %v453 = vrot.slane %v452, 1
          %v454 = vadd.f32 %v452, %v453
          %v455 = vmul.f32 %v454, 0.0009765625
          %v456 = vsub.f32 %v438, %v455
          %v457 = vsub.f32 %v439, %v455
          %v458 = vmul.f32 %v456, %v456
          %v459 = vmul.f32 %v457, %v457
          %v460 = vsel %vm392, %v458, 0.0
          %461 = vadd.xlane.f32.xlu0 %v460
          %v462 = vpop.xlane.xlu0 %461
          %v463 = vsel %vm392, %v459, 0.0
          %464 = vadd.xlane.f32.xlu0 %v463
          %v465 = vpop.xlane.xlu0 %464
          %v466 = vadd.f32 %v462, %v465
          %v467 = vrot.slane %v466, 4
          %v468 = vadd.f32 %v466, %v467
          %v469 = vrot.slane %v468, 2
          %v470 = vadd.f32 %v468, %v469
          %v471 = vrot.slane %v470, 1
          %v472 = vadd.f32 %v470, %v471
          %v473 = vmul.f32 %v472, 0.0009765625
          %v474 = vadd.f32 %v473, 1e-05
          %v475 = vrsqrt.pop %v474
          %v476 = vstv %s440
          %v477 = vmul.f32 %v475, %v476
          %v478 = vmul.f32 %v456, %v477
          %v479 = vmul.f32 %v457, %v477
          %v480 = vstv %s441
          %v481 = vadd.f32 %v478, %v480
          %v482 = vadd.f32 %v479, %v480
          %s483 = scalar_lea.vmem %s248, 16 [#allocation10]
          %484 = vst.msk [vmem:[%s483] sm:$0xff] %vm392, %v481
          %485 = vst.msk [vmem:[%s483 + $0x8] sm:$0xff] %vm392, %v482
        $region44: #{tpu_custom_call.1} parent=27 // pred_fallthru
          _
        %s486 = sand.u32 %s118, 1
        %s487 = scalar_lea.sflag [#allocation7], %s486
        %s488 = sand.u32 %s118, 1
        %s489 = smul.addr %s488, 32
        %s490 = scalar_lea.vmem [#allocation10], %s489
        // Predicated region
        $region45: #{tpu_custom_call.1} parent=27 // pred_check
          %p491 = pneg %p128
        $region46: #{tpu_custom_call.1} parent=27 // pred_check_branch
          %493 = sbr.rel (%p491) target = $region48
        $region47: #{tpu_custom_call.1} parent=27 // pred_region
          %s494 = smul.u32 2, %s35
          %s496 = ssub.s32 512, 512
          %497 = vsyncadd %s487, %s496
          %s498 = smul.addr %s494, 2
          %s499 = smul.addr %s34, 16
          %s500 = sadd.s32 %s498, %s499
          %s501 = smul.addr %s500, 128
          %s502 = scalar_lea.hbm %s4, %s501
          %s503 = sshll.u32 %s490, 4
          %s504 = int_to_ptr.vmem [resolvable:$true] %s503
          %509 = dma.vmem_to_hbm [thread:$0]  %s504, 512, %s502, %s487, 128, 128, 8
        $region48: #{tpu_custom_call.1} parent=27 // pred_fallthru
          _
      $region28: #{tpu_custom_call.1} parent=5 // pred_fallthru
        _
      %p510 = scmp.le.s32.totalorder 2, %s25
      // Predicated region
      $region49: #{tpu_custom_call.1} parent=5 // pred_check
        %p511 = pneg %p510
      $region50: #{tpu_custom_call.1} parent=5 // pred_check_branch
        %513 = sbr.rel (%p511) target = $region52
      $region51: #{tpu_custom_call.1} parent=5 // pred_region
        %s514 = ssub.s32 %s25, 2
        // Predicated region
        $region53: #{tpu_custom_call.1} parent=51 // pred_check
          %p515 = pneg %p134
        $region54: #{tpu_custom_call.1} parent=51 // pred_check_branch
          %517 = sbr.rel (%p515) target = $region56
        $region55: #{tpu_custom_call.1} parent=51 // pred_region
          %s518 = sand.u32 %s119, 1
          %s519 = scalar_lea.sflag [#allocation7], %s518
          %s520 = sand.u32 %s119, 1
          %s521 = smul.addr %s520, 32
          %s522 = scalar_lea.vmem [#allocation10], %s521
          %523 = dma.done %s519, 512
        $region56: #{tpu_custom_call.1} parent=51 // pred_fallthru
          _
      $region52: #{tpu_custom_call.1} parent=5 // pred_fallthru
        _
    $region6: #{tpu_custom_call.1} parent=1 // loop_footer
      %s29 = sadd.s32 1, %s25
    $region7: #{tpu_custom_call.1} parent=1 // loop_footer_branch
      %24 = sbr.rel target = $region3
    $region8: #{tpu_custom_call.1} parent=1 // loop_exit
      _
    %524 = vsyncpa [#allocation6], 1
    %s525 = scalar_lea.sflag [#allocation6], 1
    %526 = vsyncpa %s525, 1
    %527 = vsyncpa [#allocation9], 1
    %s528 = scalar_lea.sflag [#allocation9], 1
    %529 = vsyncpa %s528, 1
    %530 = vsyncpa [#allocation7], 1
    %s531 = scalar_lea.sflag [#allocation7], 1
    %532 = vsyncpa %s531, 1

</llo_original>
